<compile_context>
chip_gen: v5e
topology: v5e:2x2
jax: 0.10.0
libtpu: 0.0.40
codegen_flags: <defaults>
</compile_context>

<pallas_src>
import functools

import jax
import jax.numpy as jnp
from jax import lax
from jax.experimental import pallas as pl
from jax.experimental.pallas import tpu as pltpu


# ----------------------------- Pallas kernel -------------------------------
def lstm_tagger_kernel(H, T, V,
                       ids_ref,                     # (S, 2) int32 [tok, tok_reversed]
                       wemb_ref,                    # (2V, 8H) emb@W_ih folded, gate-interleaved block-diag
                       b_ref,                       # (1, 8H) gate-interleaved bias
                       whh_ref,                     # (2H, 8H) block-diag, gate-interleaved
                       p_ref,                       # (S, S)  reverse permutation
                       woutf_ref, woutb_ref,        # (H, TP) (H, TP)
                       bout_ref,                    # (1, TP)
                       out_ref,                     # (S, TP)
                       gx_ref, hrec_ref):           # scratch (S, 8H), (S, 2H)
    S = ids_ref.shape[0]
    H2, H4, H6, H8 = 2 * H, 4 * H, 6 * H, 8 * H
    TP = out_ref.shape[1]
    V2 = 2 * V

    # --- 1. Fused embedding lookup + input projection (one-hot MXU matmul) --
    # Row k of gx holds gate-interleaved blocks
    # [i_f(k), i_b(S-1-k), f_f(k), f_b(S-1-k), g_f, g_b, o_f, o_b].
    ids = ids_ref[...]                                        # (S, 2)
    col_v = lax.broadcasted_iota(jnp.int32, (S, V2), 1)
    tgt = jnp.where(col_v < V, ids[:, 0:1], ids[:, 1:2] + V)
    onehot = (col_v == tgt).astype(jnp.float32)               # (S, 2V)
    gx_ref[...] = jnp.dot(onehot, wemb_ref[...],
                          preferred_element_type=jnp.float32) + b_ref[...]

    # --- 2. Fused forward+backward recurrence (single serial chain) ---------
    h0 = jnp.zeros((1, H2), jnp.float32)   # [h_f | h_b]
    c0 = jnp.zeros((1, H2), jnp.float32)   # [c_f | c_b]

    def step(k, carry):
        h, c = carry
        g = gx_ref[pl.ds(k, 1), :] + jnp.dot(
            h, whh_ref[...], preferred_element_type=jnp.float32)   # (1, 8H)
        i_g = jax.nn.sigmoid(g[:, 0:H2])
        f_g = jax.nn.sigmoid(g[:, H2:H4])
        g_g = jnp.tanh(g[:, H4:H6])
        o_g = jax.nn.sigmoid(g[:, H6:H8])
        c = f_g * c + i_g * g_g
        h = o_g * jnp.tanh(c)
        hrec_ref[pl.ds(k, 1), :] = h          # lane-dense row write at offset 0
        return h, c

    # S is static and tiny -> full unroll (rolled short loops cost ~35%).
    lax.fori_loop(0, S, step, (h0, c0), unroll=True)

    # --- 3. hidden2tag + masked log_softmax ----------------------------------
    hrec = hrec_ref[...]                      # row k = [h_f(t=k) | h_b(t=S-1-k)]
    hf = hrec[:, 0:H]
    # time-align the backward half with a tiny reverse-permutation matmul
    hb = jnp.dot(p_ref[...], hrec[:, H:H2],
                 preferred_element_type=jnp.float32)
    tag = (jnp.dot(hf, woutf_ref[...], preferred_element_type=jnp.float32)
           + jnp.dot(hb, woutb_ref[...], preferred_element_type=jnp.float32)
           + bout_ref[...])                   # (S, TP); only first T lanes valid

    col_t = lax.broadcasted_iota(jnp.int32, (S, TP), 1)
    valid = col_t < T
    tag = jnp.where(valid, tag, jnp.float32(-1e30))
    m = jnp.max(tag, axis=1, keepdims=True)
    z = tag - m
    e = jnp.where(valid, jnp.exp(z), 0.0)
    lse = jnp.log(jnp.sum(e, axis=1, keepdims=True))
    out_ref[...] = z - lse


# --------------------------- parameter packing -------------------------------
def pack_params(params, tag_pad=128):
    """One-time weight prep: fold the embedding table into the input weights,
    gate-interleave both directions, pad the output projection to 128 lanes."""
    f32 = jnp.float32
    emb = params["embedding"].astype(f32)                     # (V, E)
    V, _ = emb.shape
    H = params["w_hh_f"].shape[1]
    T = params["w_out"].shape[0]

    gate = lambda w, g: w[g * H:(g + 1) * H, :].astype(f32)   # (H, E) or (H, H)
    zVH = jnp.zeros((V, H), f32)
    zHH = jnp.zeros((H, H), f32)
    bf = (params["b_ih_f"] + params["b_hh_f"]).astype(f32)
    bb = (params["b_ih_b"] + params["b_hh_b"]).astype(f32)

    # Gate-interleaved column layout: [i_f, i_b, f_f, f_b, g_f, g_b, o_f, o_b]
    wemb_blocks, whh_blocks, b_blocks = [], [], []
    for g in range(4):
        wemb_blocks.append(jnp.concatenate([emb @ gate(params["w_ih_f"], g).T, zVH], axis=0))
        wemb_blocks.append(jnp.concatenate([zVH, emb @ gate(params["w_ih_b"], g).T], axis=0))
        whh_blocks.append(jnp.concatenate([gate(params["w_hh_f"], g).T, zHH], axis=0))
        whh_blocks.append(jnp.concatenate([zHH, gate(params["w_hh_b"], g).T], axis=0))
        b_blocks.append(bf[g * H:(g + 1) * H])
        b_blocks.append(bb[g * H:(g + 1) * H])

    return {
        "wemb": jnp.concatenate(wemb_blocks, axis=1),          # (2V, 8H)
        "whh": jnp.concatenate(whh_blocks, axis=1),            # (2H, 8H)
        "b": jnp.concatenate(b_blocks)[None, :],                # (1, 8H)
        "woutf": jnp.zeros((H, tag_pad), f32).at[:, :T].set(
            params["w_out"][:, :H].T.astype(f32)),              # (H, TP)
        "woutb": jnp.zeros((H, tag_pad), f32).at[:, :T].set(
            params["w_out"][:, H:].T.astype(f32)),              # (H, TP)
        "bout": jnp.zeros((1, tag_pad), f32).at[0, :T].set(
            params["b_out"].astype(f32)),                       # (1, TP)
        "H": H, "T": T, "V": V, "TP": tag_pad,
    }


# ------------------------------- wrapper ------------------------------------
def lstm_tagger_forward(sentence, packed):
    S = sentence.shape[0]
    H, T, V, TP = packed["H"], packed["T"], packed["V"], packed["TP"]
    f32 = jnp.float32

    # Tiny per-sentence prep (S ints + SxS flip matrix); the embedding gather
    # itself happens inside the kernel via a one-hot matmul.
    idmat = jnp.stack([sentence, sentence[::-1]], axis=1).astype(jnp.int32)  # (S, 2)
    P = jnp.flip(jnp.eye(S, dtype=f32), axis=0)                              # (S, S)

    vmem = pl.BlockSpec(memory_space=pltpu.MemorySpace.VMEM)
    out_pad = pl.pallas_call(
        functools.partial(lstm_tagger_kernel, H, T, V),
        out_shape=jax.ShapeDtypeStruct((S, TP), jnp.float32),
        in_specs=[vmem] * 8,
        out_specs=vmem,
        scratch_shapes=[
            pltpu.VMEM((S, 8 * H), jnp.float32),   # fused input-gate precompute
            pltpu.VMEM((S, 2 * H), jnp.float32),   # per-step [h_f | h_b] rows
        ],
        # TODO(synk): for large S/H, chunk gx/hrec over S (grid over time
        # blocks) and raise vmem_limit_bytes; batch sentences to fill the MXU
        # -- out of scope for this single-sentence module.
    )(idmat, packed["wemb"], packed["b"], packed["whh"], P,
      packed["woutf"], packed["woutb"], packed["bout"])
    return out_pad[:, :T]


# -------------------------- pure-JAX reference ------------------------------
def ref_forward(sentence, params):
    embeds = params["embedding"][sentence].astype(jnp.float32)
    S = embeds.shape[0]
    H = params["w_hh_f"].shape[1]

    def run_dir(wih, whh, bih, bhh, reverse):
        h = jnp.zeros((H,), jnp.float32)
        c = jnp.zeros((H,), jnp.float32)
        outs = [None] * S
        order = range(S - 1, -1, -1) if reverse else range(S)
        for t in order:
            g = wih @ embeds[t] + bih + whh @ h + bhh
            i_g = jax.nn.sigmoid(g[0:H])
            f_g = jax.nn.sigmoid(g[H:2 * H])
            g_g = jnp.tanh(g[2 * H:3 * H])
            o_g = jax.nn.sigmoid(g[3 * H:4 * H])
            c = f_g * c + i_g * g_g
            h = o_g * jnp.tanh(c)
            outs[t] = h
        return jnp.stack(outs)

    hf = run_dir(params["w_ih_f"], params["w_hh_f"],
                 params["b_ih_f"], params["b_hh_f"], reverse=False)
    hb = run_dir(params["w_ih_b"], params["w_hh_b"],
                 params["b_ih_b"], params["b_hh_b"], reverse=True)
    hcat = jnp.concatenate([hf, hb], axis=1)
    tag_space = hcat @ params["w_out"].T + params["b_out"]
    return jax.nn.log_softmax(tag_space, axis=1)


# --------------------------------- main --------------------------------------
if __name__ == "__main__":
    EMBEDDING_DIM = 32
    HIDDEN_DIM = 32
    VOCAB_SIZE = 16
    TAGSET_SIZE = 8
    SEQ_LEN = 8

    key = jax.random.PRNGKey(0)
    ks = jax.random.split(key, 12)
    k_lstm = 1.0 / jnp.sqrt(HIDDEN_DIM)
    k_lin = 1.0 / jnp.sqrt(2 * HIDDEN_DIM)
    u = lambda k, shape, s: jax.random.uniform(k, shape, jnp.float32, -s, s)

    params = {
        "embedding": jax.random.normal(ks[0], (VOCAB_SIZE, EMBEDDING_DIM),
                                       jnp.float32),
        # forward direction
        "w_ih_f": u(ks[1], (4 * HIDDEN_DIM, EMBEDDING_DIM), k_lstm),
        "w_hh_f": u(ks[2], (4 * HIDDEN_DIM, HIDDEN_DIM), k_lstm),
        "b_ih_f": u(ks[3], (4 * HIDDEN_DIM,), k_lstm),
        "b_hh_f": u(ks[4], (4 * HIDDEN_DIM,), k_lstm),
        # reverse direction
        "w_ih_b": u(ks[5], (4 * HIDDEN_DIM, EMBEDDING_DIM), k_lstm),
        "w_hh_b": u(ks[6], (4 * HIDDEN_DIM, HIDDEN_DIM), k_lstm),
        "b_ih_b": u(ks[7], (4 * HIDDEN_DIM,), k_lstm),
        "b_hh_b": u(ks[8], (4 * HIDDEN_DIM,), k_lstm),
        # hidden2tag
        "w_out": u(ks[9], (TAGSET_SIZE, 2 * HIDDEN_DIM), k_lin),
        "b_out": u(ks[10], (TAGSET_SIZE,), k_lin),
    }

    sentence = jax.random.randint(ks[11], (SEQ_LEN,), 0, VOCAB_SIZE,
                                  dtype=jnp.int32)

    packed = pack_params(params)
    tag_scores = jax.block_until_ready(lstm_tagger_forward(sentence, packed))
    ref = ref_forward(sentence, params)

    assert tag_scores.shape == (SEQ_LEN, TAGSET_SIZE)
    assert jnp.max(jnp.abs(tag_scores - ref)) < 5e-3

    print("KERNEL_OK")
</pallas_src>

<mosaic_0001>
module attributes {stable_mosaic.version = 11 : i64} {
  func.func @lstm_tagger_kernel(%arg0: memref<8x2xi32, #tpu.memory_space<vmem>>, %arg1: memref<32x256xf32, #tpu.memory_space<vmem>>, %arg2: memref<1x256xf32, #tpu.memory_space<vmem>>, %arg3: memref<64x256xf32, #tpu.memory_space<vmem>>, %arg4: memref<8x8xf32, #tpu.memory_space<vmem>>, %arg5: memref<32x128xf32, #tpu.memory_space<vmem>>, %arg6: memref<32x128xf32, #tpu.memory_space<vmem>>, %arg7: memref<1x128xf32, #tpu.memory_space<vmem>>, %arg8: memref<8x128xf32, #tpu.memory_space<vmem>>, %arg9: memref<8x256xf32, #tpu.memory_space<vmem>>, %arg10: memref<8x64xf32, #tpu.memory_space<vmem>>) attributes {dimension_semantics = [], scalar_prefetch = 0 : i64, scratch_operands = 2 : i64, tpu.core_type = #tpu.core_type<tc>} {
    %c0 = arith.constant 0 : index
    %c0_0 = arith.constant 0 : index
    %0 = vector.load %arg0[%c0, %c0_0] : memref<8x2xi32, #tpu.memory_space<vmem>>, vector<8x2xi32>
    %1 = tpu.iota {dimensions = array<i32: 1>} : vector<8x32xi32>
    %c16_i32 = arith.constant 16 : i32
    %2 = vector.broadcast %c16_i32 : i32 to vector<8x32xi32>
    %3 = arith.cmpi slt, %1, %2 : vector<8x32xi32>
    %4 = vector.extract_strided_slice %0 {offsets = [0, 0], sizes = [8, 1], strides = [1, 1]} : vector<8x2xi32> to vector<8x1xi32>
    %5 = vector.extract_strided_slice %0 {offsets = [0, 1], sizes = [8, 1], strides = [1, 1]} : vector<8x2xi32> to vector<8x1xi32>
    %c16_i32_1 = arith.constant 16 : i32
    %6 = vector.broadcast %c16_i32_1 : i32 to vector<8x1xi32>
    %7 = arith.addi %5, %6 : vector<8x1xi32>
    %8 = vector.shape_cast %4 : vector<8x1xi32> to vector<8x1xi32>
    %9 = vector.broadcast %8 : vector<8x1xi32> to vector<8x32xi32>
    %10 = vector.shape_cast %7 : vector<8x1xi32> to vector<8x1xi32>
    %11 = vector.broadcast %10 : vector<8x1xi32> to vector<8x32xi32>
    %12 = arith.select %3, %9, %11 : vector<8x32xi1>, vector<8x32xi32>
    %13 = arith.cmpi eq, %1, %12 : vector<8x32xi32>
    %14 = arith.extui %13 : vector<8x32xi1> to vector<8x32xi32>
    %15 = arith.sitofp %14 : vector<8x32xi32> to vector<8x32xf32>
    %c0_2 = arith.constant 0 : index
    %c0_3 = arith.constant 0 : index
    %16 = vector.load %arg1[%c0_2, %c0_3] : memref<32x256xf32, #tpu.memory_space<vmem>>, vector<32x256xf32>
    %cst = arith.constant dense<0.000000e+00> : vector<8x256xf32>
    %17 = tpu.matmul %15, %16, %cst {dimension_numbers = #tpu.dot_dimension_numbers<[1], [0], [0], [1], [0, 0, 1, 1], [], []>} : vector<8x32xf32>, vector<32x256xf32>, vector<8x256xf32> -> vector<8x256xf32>
    %c0_4 = arith.constant 0 : index
    %c0_5 = arith.constant 0 : index
    %18 = vector.load %arg2[%c0_4, %c0_5] : memref<1x256xf32, #tpu.memory_space<vmem>>, vector<1x256xf32>
    %19 = vector.broadcast %18 : vector<1x256xf32> to vector<8x256xf32>
    %20 = arith.addf %17, %19 : vector<8x256xf32>
    %c0_6 = arith.constant 0 : index
    %c0_7 = arith.constant 0 : index
    %21 = vector.load %arg9[%c0_6, %c0_7] : memref<8x256xf32, #tpu.memory_space<vmem>>, vector<8x256xf32>
    tpu.vector_store %arg9[%c0_6, %c0_7], %20 {strides = array<i32>} : memref<8x256xf32, #tpu.memory_space<vmem>>, vector<8x256xf32>,
    %cst_8 = arith.constant 0.000000e+00 : f32
    %22 = vector.broadcast %cst_8 : f32 to vector<1x64xf32>
    %cst_9 = arith.constant 0.000000e+00 : f32
    %23 = vector.broadcast %cst_9 : f32 to vector<1x64xf32>
    %c0_i32 = arith.constant 0 : i32
    %24 = arith.index_cast %c0_i32 : i32 to index
    %c0_10 = arith.constant 0 : index
    %25 = vector.load %arg9[%24, %c0_10] : memref<8x256xf32, #tpu.memory_space<vmem>>, vector<1x256xf32>
    %c0_11 = arith.constant 0 : index
    %c0_12 = arith.constant 0 : index
    %26 = vector.load %arg3[%c0_11, %c0_12] : memref<64x256xf32, #tpu.memory_space<vmem>>, vector<64x256xf32>
    %cst_13 = arith.constant dense<0.000000e+00> : vector<1x256xf32>
    %27 = tpu.matmul %22, %26, %cst_13 {dimension_numbers = #tpu.dot_dimension_numbers<[1], [0], [0], [1], [0, 0, 1, 1], [], []>} : vector<1x64xf32>, vector<64x256xf32>, vector<1x256xf32> -> vector<1x256xf32>
    %28 = arith.addf %25, %27 : vector<1x256xf32>
    %29 = vector.extract_strided_slice %28 {offsets = [0, 0], sizes = [1, 64], strides = [1, 1]} : vector<1x256xf32> to vector<1x64xf32>
    %30 = arith.negf %29 : vector<1x64xf32>
    %31 = math.exp %30 : vector<1x64xf32>
    %cst_14 = arith.constant 1.000000e+00 : f32
    %32 = vector.broadcast %cst_14 : f32 to vector<1x64xf32>
    %33 = arith.addf %32, %31 : vector<1x64xf32>
    %34 = arith.divf %32, %33 : vector<1x64xf32>
    %35 = vector.extract_strided_slice %28 {offsets = [0, 64], sizes = [1, 64], strides = [1, 1]} : vector<1x256xf32> to vector<1x64xf32>
    %36 = arith.negf %35 : vector<1x64xf32>
    %37 = math.exp %36 : vector<1x64xf32>
    %cst_15 = arith.constant 1.000000e+00 : f32
    %38 = vector.broadcast %cst_15 : f32 to vector<1x64xf32>
    %39 = arith.addf %38, %37 : vector<1x64xf32>
    %40 = arith.divf %38, %39 : vector<1x64xf32>
    %41 = vector.extract_strided_slice %28 {offsets = [0, 128], sizes = [1, 64], strides = [1, 1]} : vector<1x256xf32> to vector<1x64xf32>
    %42 = math.tanh %41 : vector<1x64xf32>
    %43 = vector.extract_strided_slice %28 {offsets = [0, 192], sizes = [1, 64], strides = [1, 1]} : vector<1x256xf32> to vector<1x64xf32>
    %44 = arith.negf %43 : vector<1x64xf32>
    %45 = math.exp %44 : vector<1x64xf32>
    %cst_16 = arith.constant 1.000000e+00 : f32
    %46 = vector.broadcast %cst_16 : f32 to vector<1x64xf32>
    %47 = arith.addf %46, %45 : vector<1x64xf32>
    %48 = arith.divf %46, %47 : vector<1x64xf32>
    %49 = arith.mulf %40, %23 : vector<1x64xf32>
    %50 = arith.mulf %34, %42 : vector<1x64xf32>
    %51 = arith.addf %49, %50 : vector<1x64xf32>
    %52 = math.tanh %51 : vector<1x64xf32>
    %53 = arith.mulf %48, %52 : vector<1x64xf32>
    %54 = arith.index_cast %c0_i32 : i32 to index
    %c0_17 = arith.constant 0 : index
    %55 = vector.load %arg10[%54, %c0_17] : memref<8x64xf32, #tpu.memory_space<vmem>>, vector<1x64xf32>
    tpu.vector_store %arg10[%54, %c0_17], %53 {strides = array<i32>} : memref<8x64xf32, #tpu.memory_space<vmem>>, vector<1x64xf32>,
    %c1_i32 = arith.constant 1 : i32
    %56 = arith.index_cast %c1_i32 : i32 to index
    %c0_18 = arith.constant 0 : index
    %57 = vector.load %arg9[%56, %c0_18] : memref<8x256xf32, #tpu.memory_space<vmem>>, vector<1x256xf32>
    %c0_19 = arith.constant 0 : index
    %c0_20 = arith.constant 0 : index
    %58 = vector.load %arg3[%c0_19, %c0_20] : memref<64x256xf32, #tpu.memory_space<vmem>>, vector<64x256xf32>
    %cst_21 = arith.constant dense<0.000000e+00> : vector<1x256xf32>
    %59 = tpu.matmul %53, %58, %cst_21 {dimension_numbers = #tpu.dot_dimension_numbers<[1], [0], [0], [1], [0, 0, 1, 1], [], []>} : vector<1x64xf32>, vector<64x256xf32>, vector<1x256xf32> -> vector<1x256xf32>
    %60 = arith.addf %57, %59 : vector<1x256xf32>
    %61 = vector.extract_strided_slice %60 {offsets = [0, 0], sizes = [1, 64], strides = [1, 1]} : vector<1x256xf32> to vector<1x64xf32>
    %62 = arith.negf %61 : vector<1x64xf32>
    %63 = math.exp %62 : vector<1x64xf32>
    %cst_22 = arith.constant 1.000000e+00 : f32
    %64 = vector.broadcast %cst_22 : f32 to vector<1x64xf32>
    %65 = arith.addf %64, %63 : vector<1x64xf32>
    %66 = arith.divf %64, %65 : vector<1x64xf32>
    %67 = vector.extract_strided_slice %60 {offsets = [0, 64], sizes = [1, 64], strides = [1, 1]} : vector<1x256xf32> to vector<1x64xf32>
    %68 = arith.negf %67 : vector<1x64xf32>
    %69 = math.exp %68 : vector<1x64xf32>
    %cst_23 = arith.constant 1.000000e+00 : f32
    %70 = vector.broadcast %cst_23 : f32 to vector<1x64xf32>
    %71 = arith.addf %70, %69 : vector<1x64xf32>
    %72 = arith.divf %70, %71 : vector<1x64xf32>
    %73 = vector.extract_strided_slice %60 {offsets = [0, 128], sizes = [1, 64], strides = [1, 1]} : vector<1x256xf32> to vector<1x64xf32>
    %74 = math.tanh %73 : vector<1x64xf32>
    %75 = vector.extract_strided_slice %60 {offsets = [0, 192], sizes = [1, 64], strides = [1, 1]} : vector<1x256xf32> to vector<1x64xf32>
    %76 = arith.negf %75 : vector<1x64xf32>
    %77 = math.exp %76 : vector<1x64xf32>
    %cst_24 = arith.constant 1.000000e+00 : f32
    %78 = vector.broadcast %cst_24 : f32 to vector<1x64xf32>
    %79 = arith.addf %78, %77 : vector<1x64xf32>
    %80 = arith.divf %78, %79 : vector<1x64xf32>
    %81 = arith.mulf %72, %51 : vector<1x64xf32>
    %82 = arith.mulf %66, %74 : vector<1x64xf32>
    %83 = arith.addf %81, %82 : vector<1x64xf32>
    %84 = math.tanh %83 : vector<1x64xf32>
    %85 = arith.mulf %80, %84 : vector<1x64xf32>
    %86 = arith.index_cast %c1_i32 : i32 to index
    %c0_25 = arith.constant 0 : index
    %87 = vector.load %arg10[%86, %c0_25] : memref<8x64xf32, #tpu.memory_space<vmem>>, vector<1x64xf32>
    tpu.vector_store %arg10[%86, %c0_25], %85 {strides = array<i32>} : memref<8x64xf32, #tpu.memory_space<vmem>>, vector<1x64xf32>,
    %c2_i32 = arith.constant 2 : i32
    %88 = arith.index_cast %c2_i32 : i32 to index
    %c0_26 = arith.constant 0 : index
    %89 = vector.load %arg9[%88, %c0_26] : memref<8x256xf32, #tpu.memory_space<vmem>>, vector<1x256xf32>
    %c0_27 = arith.constant 0 : index
    %c0_28 = arith.constant 0 : index
    %90 = vector.load %arg3[%c0_27, %c0_28] : memref<64x256xf32, #tpu.memory_space<vmem>>, vector<64x256xf32>
    %cst_29 = arith.constant dense<0.000000e+00> : vector<1x256xf32>
    %91 = tpu.matmul %85, %90, %cst_29 {dimension_numbers = #tpu.dot_dimension_numbers<[1], [0], [0], [1], [0, 0, 1, 1], [], []>} : vector<1x64xf32>, vector<64x256xf32>, vector<1x256xf32> -> vector<1x256xf32>
    %92 = arith.addf %89, %91 : vector<1x256xf32>
    %93 = vector.extract_strided_slice %92 {offsets = [0, 0], sizes = [1, 64], strides = [1, 1]} : vector<1x256xf32> to vector<1x64xf32>
    %94 = arith.negf %93 : vector<1x64xf32>
    %95 = math.exp %94 : vector<1x64xf32>
    %cst_30 = arith.constant 1.000000e+00 : f32
    %96 = vector.broadcast %cst_30 : f32 to vector<1x64xf32>
    %97 = arith.addf %96, %95 : vector<1x64xf32>
    %98 = arith.divf %96, %97 : vector<1x64xf32>
    %99 = vector.extract_strided_slice %92 {offsets = [0, 64], sizes = [1, 64], strides = [1, 1]} : vector<1x256xf32> to vector<1x64xf32>
    %100 = arith.negf %99 : vector<1x64xf32>
    %101 = math.exp %100 : vector<1x64xf32>
    %cst_31 = arith.constant 1.000000e+00 : f32
    %102 = vector.broadcast %cst_31 : f32 to vector<1x64xf32>
    %103 = arith.addf %102, %101 : vector<1x64xf32>
    %104 = arith.divf %102, %103 : vector<1x64xf32>
    %105 = vector.extract_strided_slice %92 {offsets = [0, 128], sizes = [1, 64], strides = [1, 1]} : vector<1x256xf32> to vector<1x64xf32>
    %106 = math.tanh %105 : vector<1x64xf32>
    %107 = vector.extract_strided_slice %92 {offsets = [0, 192], sizes = [1, 64], strides = [1, 1]} : vector<1x256xf32> to vector<1x64xf32>
    %108 = arith.negf %107 : vector<1x64xf32>
    %109 = math.exp %108 : vector<1x64xf32>
    %cst_32 = arith.constant 1.000000e+00 : f32
    %110 = vector.broadcast %cst_32 : f32 to vector<1x64xf32>
    %111 = arith.addf %110, %109 : vector<1x64xf32>
    %112 = arith.divf %110, %111 : vector<1x64xf32>
    %113 = arith.mulf %104, %83 : vector<1x64xf32>
    %114 = arith.mulf %98, %106 : vector<1x64xf32>
    %115 = arith.addf %113, %114 : vector<1x64xf32>
    %116 = math.tanh %115 : vector<1x64xf32>
    %117 = arith.mulf %112, %116 : vector<1x64xf32>
    %118 = arith.index_cast %c2_i32 : i32 to index
    %c0_33 = arith.constant 0 : index
    %119 = vector.load %arg10[%118, %c0_33] : memref<8x64xf32, #tpu.memory_space<vmem>>, vector<1x64xf32>
    tpu.vector_store %arg10[%118, %c0_33], %117 {strides = array<i32>} : memref<8x64xf32, #tpu.memory_space<vmem>>, vector<1x64xf32>,
    %c3_i32 = arith.constant 3 : i32
    %120 = arith.index_cast %c3_i32 : i32 to index
    %c0_34 = arith.constant 0 : index
    %121 = vector.load %arg9[%120, %c0_34] : memref<8x256xf32, #tpu.memory_space<vmem>>, vector<1x256xf32>
    %c0_35 = arith.constant 0 : index
    %c0_36 = arith.constant 0 : index
    %122 = vector.load %arg3[%c0_35, %c0_36] : memref<64x256xf32, #tpu.memory_space<vmem>>, vector<64x256xf32>
    %cst_37 = arith.constant dense<0.000000e+00> : vector<1x256xf32>
    %123 = tpu.matmul %117, %122, %cst_37 {dimension_numbers = #tpu.dot_dimension_numbers<[1], [0], [0], [1], [0, 0, 1, 1], [], []>} : vector<1x64xf32>, vector<64x256xf32>, vector<1x256xf32> -> vector<1x256xf32>
    %124 = arith.addf %121, %123 : vector<1x256xf32>
    %125 = vector.extract_strided_slice %124 {offsets = [0, 0], sizes = [1, 64], strides = [1, 1]} : vector<1x256xf32> to vector<1x64xf32>
    %126 = arith.negf %125 : vector<1x64xf32>
    %127 = math.exp %126 : vector<1x64xf32>
    %cst_38 = arith.constant 1.000000e+00 : f32
    %128 = vector.broadcast %cst_38 : f32 to vector<1x64xf32>
    %129 = arith.addf %128, %127 : vector<1x64xf32>
    %130 = arith.divf %128, %129 : vector<1x64xf32>
    %131 = vector.extract_strided_slice %124 {offsets = [0, 64], sizes = [1, 64], strides = [1, 1]} : vector<1x256xf32> to vector<1x64xf32>
    %132 = arith.negf %131 : vector<1x64xf32>
    %133 = math.exp %132 : vector<1x64xf32>
    %cst_39 = arith.constant 1.000000e+00 : f32
    %134 = vector.broadcast %cst_39 : f32 to vector<1x64xf32>
    %135 = arith.addf %134, %133 : vector<1x64xf32>
    %136 = arith.divf %134, %135 : vector<1x64xf32>
    %137 = vector.extract_strided_slice %124 {offsets = [0, 128], sizes = [1, 64], strides = [1, 1]} : vector<1x256xf32> to vector<1x64xf32>
    %138 = math.tanh %137 : vector<1x64xf32>
    %139 = vector.extract_strided_slice %124 {offsets = [0, 192], sizes = [1, 64], strides = [1, 1]} : vector<1x256xf32> to vector<1x64xf32>
    %140 = arith.negf %139 : vector<1x64xf32>
    %141 = math.exp %140 : vector<1x64xf32>
    %cst_40 = arith.constant 1.000000e+00 : f32
    %142 = vector.broadcast %cst_40 : f32 to vector<1x64xf32>
    %143 = arith.addf %142, %141 : vector<1x64xf32>
    %144 = arith.divf %142, %143 : vector<1x64xf32>
    %145 = arith.mulf %136, %115 : vector<1x64xf32>
    %146 = arith.mulf %130, %138 : vector<1x64xf32>
    %147 = arith.addf %145, %146 : vector<1x64xf32>
    %148 = math.tanh %147 : vector<1x64xf32>
    %149 = arith.mulf %144, %148 : vector<1x64xf32>
    %150 = arith.index_cast %c3_i32 : i32 to index
    %c0_41 = arith.constant 0 : index
    %151 = vector.load %arg10[%150, %c0_41] : memref<8x64xf32, #tpu.memory_space<vmem>>, vector<1x64xf32>
    tpu.vector_store %arg10[%150, %c0_41], %149 {strides = array<i32>} : memref<8x64xf32, #tpu.memory_space<vmem>>, vector<1x64xf32>,
    %c4_i32 = arith.constant 4 : i32
    %152 = arith.index_cast %c4_i32 : i32 to index
    %c0_42 = arith.constant 0 : index
    %153 = vector.load %arg9[%152, %c0_42] : memref<8x256xf32, #tpu.memory_space<vmem>>, vector<1x256xf32>
    %c0_43 = arith.constant 0 : index
    %c0_44 = arith.constant 0 : index
    %154 = vector.load %arg3[%c0_43, %c0_44] : memref<64x256xf32, #tpu.memory_space<vmem>>, vector<64x256xf32>
    %cst_45 = arith.constant dense<0.000000e+00> : vector<1x256xf32>
    %155 = tpu.matmul %149, %154, %cst_45 {dimension_numbers = #tpu.dot_dimension_numbers<[1], [0], [0], [1], [0, 0, 1, 1], [], []>} : vector<1x64xf32>, vector<64x256xf32>, vector<1x256xf32> -> vector<1x256xf32>
    %156 = arith.addf %153, %155 : vector<1x256xf32>
    %157 = vector.extract_strided_slice %156 {offsets = [0, 0], sizes = [1, 64], strides = [1, 1]} : vector<1x256xf32> to vector<1x64xf32>
    %158 = arith.negf %157 : vector<1x64xf32>
    %159 = math.exp %158 : vector<1x64xf32>
    %cst_46 = arith.constant 1.000000e+00 : f32
    %160 = vector.broadcast %cst_46 : f32 to vector<1x64xf32>
    %161 = arith.addf %160, %159 : vector<1x64xf32>
    %162 = arith.divf %160, %161 : vector<1x64xf32>
    %163 = vector.extract_strided_slice %156 {offsets = [0, 64], sizes = [1, 64], strides = [1, 1]} : vector<1x256xf32> to vector<1x64xf32>
    %164 = arith.negf %163 : vector<1x64xf32>
    %165 = math.exp %164 : vector<1x64xf32>
    %cst_47 = arith.constant 1.000000e+00 : f32
    %166 = vector.broadcast %cst_47 : f32 to vector<1x64xf32>
    %167 = arith.addf %166, %165 : vector<1x64xf32>
    %168 = arith.divf %166, %167 : vector<1x64xf32>
    %169 = vector.extract_strided_slice %156 {offsets = [0, 128], sizes = [1, 64], strides = [1, 1]} : vector<1x256xf32> to vector<1x64xf32>
    %170 = math.tanh %169 : vector<1x64xf32>
    %171 = vector.extract_strided_slice %156 {offsets = [0, 192], sizes = [1, 64], strides = [1, 1]} : vector<1x256xf32> to vector<1x64xf32>
    %172 = arith.negf %171 : vector<1x64xf32>
    %173 = math.exp %172 : vector<1x64xf32>
    %cst_48 = arith.constant 1.000000e+00 : f32
    %174 = vector.broadcast %cst_48 : f32 to vector<1x64xf32>
    %175 = arith.addf %174, %173 : vector<1x64xf32>
    %176 = arith.divf %174, %175 : vector<1x64xf32>
    %177 = arith.mulf %168, %147 : vector<1x64xf32>
    %178 = arith.mulf %162, %170 : vector<1x64xf32>
    %179 = arith.addf %177, %178 : vector<1x64xf32>
    %180 = math.tanh %179 : vector<1x64xf32>
    %181 = arith.mulf %176, %180 : vector<1x64xf32>
    %182 = arith.index_cast %c4_i32 : i32 to index
    %c0_49 = arith.constant 0 : index
    %183 = vector.load %arg10[%182, %c0_49] : memref<8x64xf32, #tpu.memory_space<vmem>>, vector<1x64xf32>
    tpu.vector_store %arg10[%182, %c0_49], %181 {strides = array<i32>} : memref<8x64xf32, #tpu.memory_space<vmem>>, vector<1x64xf32>,
    %c5_i32 = arith.constant 5 : i32
    %184 = arith.index_cast %c5_i32 : i32 to index
    %c0_50 = arith.constant 0 : index
    %185 = vector.load %arg9[%184, %c0_50] : memref<8x256xf32, #tpu.memory_space<vmem>>, vector<1x256xf32>
    %c0_51 = arith.constant 0 : index
    %c0_52 = arith.constant 0 : index
    %186 = vector.load %arg3[%c0_51, %c0_52] : memref<64x256xf32, #tpu.memory_space<vmem>>, vector<64x256xf32>
    %cst_53 = arith.constant dense<0.000000e+00> : vector<1x256xf32>
    %187 = tpu.matmul %181, %186, %cst_53 {dimension_numbers = #tpu.dot_dimension_numbers<[1], [0], [0], [1], [0, 0, 1, 1], [], []>} : vector<1x64xf32>, vector<64x256xf32>, vector<1x256xf32> -> vector<1x256xf32>
    %188 = arith.addf %185, %187 : vector<1x256xf32>
    %189 = vector.extract_strided_slice %188 {offsets = [0, 0], sizes = [1, 64], strides = [1, 1]} : vector<1x256xf32> to vector<1x64xf32>
    %190 = arith.negf %189 : vector<1x64xf32>
    %191 = math.exp %190 : vector<1x64xf32>
    %cst_54 = arith.constant 1.000000e+00 : f32
    %192 = vector.broadcast %cst_54 : f32 to vector<1x64xf32>
    %193 = arith.addf %192, %191 : vector<1x64xf32>
    %194 = arith.divf %192, %193 : vector<1x64xf32>
    %195 = vector.extract_strided_slice %188 {offsets = [0, 64], sizes = [1, 64], strides = [1, 1]} : vector<1x256xf32> to vector<1x64xf32>
    %196 = arith.negf %195 : vector<1x64xf32>
    %197 = math.exp %196 : vector<1x64xf32>
    %cst_55 = arith.constant 1.000000e+00 : f32
    %198 = vector.broadcast %cst_55 : f32 to vector<1x64xf32>
    %199 = arith.addf %198, %197 : vector<1x64xf32>
    %200 = arith.divf %198, %199 : vector<1x64xf32>
    %201 = vector.extract_strided_slice %188 {offsets = [0, 128], sizes = [1, 64], strides = [1, 1]} : vector<1x256xf32> to vector<1x64xf32>
    %202 = math.tanh %201 : vector<1x64xf32>
    %203 = vector.extract_strided_slice %188 {offsets = [0, 192], sizes = [1, 64], strides = [1, 1]} : vector<1x256xf32> to vector<1x64xf32>
    %204 = arith.negf %203 : vector<1x64xf32>
    %205 = math.exp %204 : vector<1x64xf32>
    %cst_56 = arith.constant 1.000000e+00 : f32
    %206 = vector.broadcast %cst_56 : f32 to vector<1x64xf32>
    %207 = arith.addf %206, %205 : vector<1x64xf32>
    %208 = arith.divf %206, %207 : vector<1x64xf32>
    %209 = arith.mulf %200, %179 : vector<1x64xf32>
    %210 = arith.mulf %194, %202 : vector<1x64xf32>
    %211 = arith.addf %209, %210 : vector<1x64xf32>
    %212 = math.tanh %211 : vector<1x64xf32>
    %213 = arith.mulf %208, %212 : vector<1x64xf32>
    %214 = arith.index_cast %c5_i32 : i32 to index
    %c0_57 = arith.constant 0 : index
    %215 = vector.load %arg10[%214, %c0_57] : memref<8x64xf32, #tpu.memory_space<vmem>>, vector<1x64xf32>
    tpu.vector_store %arg10[%214, %c0_57], %213 {strides = array<i32>} : memref<8x64xf32, #tpu.memory_space<vmem>>, vector<1x64xf32>,
    %c6_i32 = arith.constant 6 : i32
    %216 = arith.index_cast %c6_i32 : i32 to index
    %c0_58 = arith.constant 0 : index
    %217 = vector.load %arg9[%216, %c0_58] : memref<8x256xf32, #tpu.memory_space<vmem>>, vector<1x256xf32>
    %c0_59 = arith.constant 0 : index
    %c0_60 = arith.constant 0 : index
    %218 = vector.load %arg3[%c0_59, %c0_60] : memref<64x256xf32, #tpu.memory_space<vmem>>, vector<64x256xf32>
    %cst_61 = arith.constant dense<0.000000e+00> : vector<1x256xf32>
    %219 = tpu.matmul %213, %218, %cst_61 {dimension_numbers = #tpu.dot_dimension_numbers<[1], [0], [0], [1], [0, 0, 1, 1], [], []>} : vector<1x64xf32>, vector<64x256xf32>, vector<1x256xf32> -> vector<1x256xf32>
    %220 = arith.addf %217, %219 : vector<1x256xf32>
    %221 = vector.extract_strided_slice %220 {offsets = [0, 0], sizes = [1, 64], strides = [1, 1]} : vector<1x256xf32> to vector<1x64xf32>
    %222 = arith.negf %221 : vector<1x64xf32>
    %223 = math.exp %222 : vector<1x64xf32>
    %cst_62 = arith.constant 1.000000e+00 : f32
    %224 = vector.broadcast %cst_62 : f32 to vector<1x64xf32>
    %225 = arith.addf %224, %223 : vector<1x64xf32>
    %226 = arith.divf %224, %225 : vector<1x64xf32>
    %227 = vector.extract_strided_slice %220 {offsets = [0, 64], sizes = [1, 64], strides = [1, 1]} : vector<1x256xf32> to vector<1x64xf32>
    %228 = arith.negf %227 : vector<1x64xf32>
    %229 = math.exp %228 : vector<1x64xf32>
    %cst_63 = arith.constant 1.000000e+00 : f32
    %230 = vector.broadcast %cst_63 : f32 to vector<1x64xf32>
    %231 = arith.addf %230, %229 : vector<1x64xf32>
    %232 = arith.divf %230, %231 : vector<1x64xf32>
    %233 = vector.extract_strided_slice %220 {offsets = [0, 128], sizes = [1, 64], strides = [1, 1]} : vector<1x256xf32> to vector<1x64xf32>
    %234 = math.tanh %233 : vector<1x64xf32>
    %235 = vector.extract_strided_slice %220 {offsets = [0, 192], sizes = [1, 64], strides = [1, 1]} : vector<1x256xf32> to vector<1x64xf32>
    %236 = arith.negf %235 : vector<1x64xf32>
    %237 = math.exp %236 : vector<1x64xf32>
    %cst_64 = arith.constant 1.000000e+00 : f32
    %238 = vector.broadcast %cst_64 : f32 to vector<1x64xf32>
    %239 = arith.addf %238, %237 : vector<1x64xf32>
    %240 = arith.divf %238, %239 : vector<1x64xf32>
    %241 = arith.mulf %232, %211 : vector<1x64xf32>
    %242 = arith.mulf %226, %234 : vector<1x64xf32>
    %243 = arith.addf %241, %242 : vector<1x64xf32>
    %244 = math.tanh %243 : vector<1x64xf32>
    %245 = arith.mulf %240, %244 : vector<1x64xf32>
    %246 = arith.index_cast %c6_i32 : i32 to index
    %c0_65 = arith.constant 0 : index
    %247 = vector.load %arg10[%246, %c0_65] : memref<8x64xf32, #tpu.memory_space<vmem>>, vector<1x64xf32>
    tpu.vector_store %arg10[%246, %c0_65], %245 {strides = array<i32>} : memref<8x64xf32, #tpu.memory_space<vmem>>, vector<1x64xf32>,
    %c7_i32 = arith.constant 7 : i32
    %248 = arith.index_cast %c7_i32 : i32 to index
    %c0_66 = arith.constant 0 : index
    %249 = vector.load %arg9[%248, %c0_66] : memref<8x256xf32, #tpu.memory_space<vmem>>, vector<1x256xf32>
    %c0_67 = arith.constant 0 : index
    %c0_68 = arith.constant 0 : index
    %250 = vector.load %arg3[%c0_67, %c0_68] : memref<64x256xf32, #tpu.memory_space<vmem>>, vector<64x256xf32>
    %cst_69 = arith.constant dense<0.000000e+00> : vector<1x256xf32>
    %251 = tpu.matmul %245, %250, %cst_69 {dimension_numbers = #tpu.dot_dimension_numbers<[1], [0], [0], [1], [0, 0, 1, 1], [], []>} : vector<1x64xf32>, vector<64x256xf32>, vector<1x256xf32> -> vector<1x256xf32>
    %252 = arith.addf %249, %251 : vector<1x256xf32>
    %253 = vector.extract_strided_slice %252 {offsets = [0, 0], sizes = [1, 64], strides = [1, 1]} : vector<1x256xf32> to vector<1x64xf32>
    %254 = arith.negf %253 : vector<1x64xf32>
    %255 = math.exp %254 : vector<1x64xf32>
    %cst_70 = arith.constant 1.000000e+00 : f32
    %256 = vector.broadcast %cst_70 : f32 to vector<1x64xf32>
    %257 = arith.addf %256, %255 : vector<1x64xf32>
    %258 = arith.divf %256, %257 : vector<1x64xf32>
    %259 = vector.extract_strided_slice %252 {offsets = [0, 64], sizes = [1, 64], strides = [1, 1]} : vector<1x256xf32> to vector<1x64xf32>
    %260 = arith.negf %259 : vector<1x64xf32>
    %261 = math.exp %260 : vector<1x64xf32>
    %cst_71 = arith.constant 1.000000e+00 : f32
    %262 = vector.broadcast %cst_71 : f32 to vector<1x64xf32>
    %263 = arith.addf %262, %261 : vector<1x64xf32>
    %264 = arith.divf %262, %263 : vector<1x64xf32>
    %265 = vector.extract_strided_slice %252 {offsets = [0, 128], sizes = [1, 64], strides = [1, 1]} : vector<1x256xf32> to vector<1x64xf32>
    %266 = math.tanh %265 : vector<1x64xf32>
    %267 = vector.extract_strided_slice %252 {offsets = [0, 192], sizes = [1, 64], strides = [1, 1]} : vector<1x256xf32> to vector<1x64xf32>
    %268 = arith.negf %267 : vector<1x64xf32>
    %269 = math.exp %268 : vector<1x64xf32>
    %cst_72 = arith.constant 1.000000e+00 : f32
    %270 = vector.broadcast %cst_72 : f32 to vector<1x64xf32>
    %271 = arith.addf %270, %269 : vector<1x64xf32>
    %272 = arith.divf %270, %271 : vector<1x64xf32>
    %273 = arith.mulf %264, %243 : vector<1x64xf32>
    %274 = arith.mulf %258, %266 : vector<1x64xf32>
    %275 = arith.addf %273, %274 : vector<1x64xf32>
    %276 = math.tanh %275 : vector<1x64xf32>
    %277 = arith.mulf %272, %276 : vector<1x64xf32>
    %278 = arith.index_cast %c7_i32 : i32 to index
    %c0_73 = arith.constant 0 : index
    %279 = vector.load %arg10[%278, %c0_73] : memref<8x64xf32, #tpu.memory_space<vmem>>, vector<1x64xf32>
    tpu.vector_store %arg10[%278, %c0_73], %277 {strides = array<i32>} : memref<8x64xf32, #tpu.memory_space<vmem>>, vector<1x64xf32>,
    %c8_i32 = arith.constant 8 : i32
    %c0_74 = arith.constant 0 : index
    %c0_75 = arith.constant 0 : index
    %280 = vector.load %arg10[%c0_74, %c0_75] : memref<8x64xf32, #tpu.memory_space<vmem>>, vector<8x64xf32>
    %281 = vector.extract_strided_slice %280 {offsets = [0, 0], sizes = [8, 32], strides = [1, 1]} : vector<8x64xf32> to vector<8x32xf32>
    %c0_76 = arith.constant 0 : index
    %c0_77 = arith.constant 0 : index
    %282 = vector.load %arg4[%c0_76, %c0_77] : memref<8x8xf32, #tpu.memory_space<vmem>>, vector<8x8xf32>
    %283 = vector.extract_strided_slice %280 {offsets = [0, 32], sizes = [8, 32], strides = [1, 1]} : vector<8x64xf32> to vector<8x32xf32>
    %cst_78 = arith.constant dense<0.000000e+00> : vector<8x32xf32>
    %284 = tpu.matmul %282, %283, %cst_78 {dimension_numbers = #tpu.dot_dimension_numbers<[1], [0], [0], [1], [0, 0, 1, 1], [], []>} : vector<8x8xf32>, vector<8x32xf32>, vector<8x32xf32> -> vector<8x32xf32>
    %c0_79 = arith.constant 0 : index
    %c0_80 = arith.constant 0 : index
    %285 = vector.load %arg5[%c0_79, %c0_80] : memref<32x128xf32, #tpu.memory_space<vmem>>, vector<32x128xf32>
    %cst_81 = arith.constant dense<0.000000e+00> : vector<8x128xf32>
    %286 = tpu.matmul %281, %285, %cst_81 {dimension_numbers = #tpu.dot_dimension_numbers<[1], [0], [0], [1], [0, 0, 1, 1], [], []>} : vector<8x32xf32>, vector<32x128xf32>, vector<8x128xf32> -> vector<8x128xf32>
    %c0_82 = arith.constant 0 : index
    %c0_83 = arith.constant 0 : index
    %287 = vector.load %arg6[%c0_82, %c0_83] : memref<32x128xf32, #tpu.memory_space<vmem>>, vector<32x128xf32>
    %cst_84 = arith.constant dense<0.000000e+00> : vector<8x128xf32>
    %288 = tpu.matmul %284, %287, %cst_84 {dimension_numbers = #tpu.dot_dimension_numbers<[1], [0], [0], [1], [0, 0, 1, 1], [], []>} : vector<8x32xf32>, vector<32x128xf32>, vector<8x128xf32> -> vector<8x128xf32>
    %289 = arith.addf %286, %288 : vector<8x128xf32>
    %c0_85 = arith.constant 0 : index
    %c0_86 = arith.constant 0 : index
    %290 = vector.load %arg7[%c0_85, %c0_86] : memref<1x128xf32, #tpu.memory_space<vmem>>, vector<1x128xf32>
    %291 = vector.broadcast %290 : vector<1x128xf32> to vector<8x128xf32>
    %292 = arith.addf %289, %291 : vector<8x128xf32>
    %293 = tpu.iota {dimensions = array<i32: 1>} : vector<8x128xi32>
    %c8_i32_87 = arith.constant 8 : i32
    %294 = vector.broadcast %c8_i32_87 : i32 to vector<8x128xi32>
    %295 = arith.cmpi slt, %293, %294 : vector<8x128xi32>
    %cst_88 = arith.constant -1.000000e+30 : f32
    %296 = vector.broadcast %cst_88 : f32 to vector<8x128xf32>
    %297 = arith.select %295, %292, %296 : vector<8x128xi1>, vector<8x128xf32>
    %cst_89 = arith.constant dense<0xFF800000> : vector<8xf32>
    %298 = vector.multi_reduction <maximumf>, %297, %cst_89 [1] : vector<8x128xf32> to vector<8xf32>
    %299 = vector.shape_cast %298 : vector<8xf32> to vector<8x1xf32>
    %300 = vector.broadcast %299 : vector<8x1xf32> to vector<8x128xf32>
    %301 = arith.subf %297, %300 : vector<8x128xf32>
    %302 = math.exp %301 : vector<8x128xf32>
    %cst_90 = arith.constant 0.000000e+00 : f32
    %303 = vector.broadcast %cst_90 : f32 to vector<8x128xf32>
    %304 = arith.select %295, %302, %303 : vector<8x128xi1>, vector<8x128xf32>
    %cst_91 = arith.constant dense<0.000000e+00> : vector<8xf32>
    %305 = vector.multi_reduction <add>, %304, %cst_91 [1] : vector<8x128xf32> to vector<8xf32>
    %306 = vector.shape_cast %305 : vector<8xf32> to vector<8x1xf32>
    %307 = math.log %306 : vector<8x1xf32>
    %308 = vector.broadcast %307 : vector<8x1xf32> to vector<8x128xf32>
    %309 = arith.subf %301, %308 : vector<8x128xf32>
    %c0_92 = arith.constant 0 : index
    %c0_93 = arith.constant 0 : index
    %310 = vector.load %arg8[%c0_92, %c0_93] : memref<8x128xf32, #tpu.memory_space<vmem>>, vector<8x128xf32>
    tpu.vector_store %arg8[%c0_92, %c0_93], %309 {strides = array<i32>} : memref<8x128xf32, #tpu.memory_space<vmem>>, vector<8x128xf32>,
    return
  }
}

</mosaic_0001>

<llo_original>
// kernel: tpu_custom_call.1
$region0: #{tpu_custom_call.1}
  #allocation0 [shape = 'u32[]', space=smem, size = 0x4, offset = 0x4, fixed_abs, tag = 'smem constant byte address 0x4 - core index']
  #allocation1 [shape = 'u32[72,128]{1,0:T(1,128)}', space=vmem, size = 0x9000, scoped, tag = 'internal scratch']
  #allocation2 [shape = 'f32[8,256]{1,0:T(8,128)}', space=vmem, size = 0x2000, scoped, tag = 'scratch operand']
  #allocation3 [shape = 'f32[8,64]{1,0:T(8,128)}', space=vmem, size = 0x1000, scoped, tag = 'scratch operand']
  %s0 = inlined_call_operand.vmem [shape: s32[8,2], index: 0, kind: input, shape index: {}]
  %s1 = inlined_call_operand.hbm [shape: f32[32,256], index: 1, kind: input, shape index: {}]
  %s2 = inlined_call_operand.vmem [shape: f32[1,256], index: 2, kind: input, shape index: {}]
  %s3 = inlined_call_operand.hbm [shape: f32[64,256], index: 3, kind: input, shape index: {}]
  %s4 = inlined_call_operand.vmem [shape: f32[8,8], index: 4, kind: input, shape index: {}]
  %s5 = inlined_call_operand.hbm [shape: f32[32,128], index: 5, kind: input, shape index: {}]
  %s6 = inlined_call_operand.hbm [shape: f32[32,128], index: 6, kind: input, shape index: {}]
  %s7 = inlined_call_operand.vmem [shape: f32[1,128], index: 7, kind: input, shape index: {}]
  %s8 = inlined_call_operand.hbm [shape: f32[8,128], index: 8, kind: output, shape index: {}]
  %s9 = sld [smem:[#allocation0]]
  $region58: #{tpu_custom_call.1} parent=0
    _
  %s11 = ssub.s32 1, %s9
  %s12 = scalar_select 0, %s11, %s9
  $region1: #{tpu_custom_call.1} parent=0
    #allocation4 [shape = 'u8[32768]{0}', space=vmem, size = 0x8000, scoped, tag = 'input window, operand 1, single buffered']
    #allocation5 [shape = 's32[1]{0}', space=sflag, size = 0x4, scoped, tag = 'scoped memory for tpu_custom_call.1']
    #allocation6 [shape = 's32[1]{0}', space=sflag, size = 0x4, scoped, tag = 'scoped memory for tpu_custom_call.1']
    #allocation7 [shape = 'u8[65536]{0}', space=vmem, size = 0x10000, scoped, tag = 'input window, operand 3, single buffered']
    #allocation8 [shape = 's32[1]{0}', space=sflag, size = 0x4, scoped, tag = 'scoped memory for tpu_custom_call.1']
    #allocation9 [shape = 'u8[16384]{0}', space=vmem, size = 0x4000, scoped, tag = 'input window, operand 5, single buffered']
    #allocation10 [shape = 'u8[16384]{0}', space=vmem, size = 0x4000, scoped, tag = 'input window, operand 6, single buffered']
    #allocation11 [shape = 's32[1]{0}', space=sflag, size = 0x4, scoped, tag = 'scoped memory for tpu_custom_call.1']
    #allocation12 [shape = 'u8[4096]{0}', space=vmem, size = 0x1000, scoped, tag = 'output window, operand 0, single buffered']
    %13 = vsyncpa [#allocation5], 0
    %14 = vsyncpa [#allocation8], 0
    %15 = vsyncpa [#allocation11], 0
    %16 = vsyncpa [#allocation6], 0
    // Predicated region
    $region2: #{tpu_custom_call.1} parent=1 // pred_check
      _
    $region3: #{tpu_custom_call.1} parent=1 // pred_check_branch
      %18 = sbr.rel (0) target = $region5
    $region4: #{tpu_custom_call.1} parent=1 // pred_region
      _
    $region5: #{tpu_custom_call.1} parent=1 // pred_fallthru
      _
    // Predicated region
    $region6: #{tpu_custom_call.1} parent=1 // pred_check
      _
    $region7: #{tpu_custom_call.1} parent=1 // pred_check_branch
      %20 = sbr.rel (0) target = $region9
    $region8: #{tpu_custom_call.1} parent=1 // pred_region
      %22 = vsyncadd [#allocation5], 0
      %s23 = sshll.u32 %s1, 4
      %s24 = int_to_ptr.hbm [resolvable:$true] %s23
      %s25 = sshll.u32 [#allocation4], 4
      %s26 = int_to_ptr.vmem [resolvable:$true] %s25
      %31 = dma.hbm_to_vmem [thread:$0]  %s24, 1024, %s26, [#allocation5], 256, 256, 16
    $region9: #{tpu_custom_call.1} parent=1 // pred_fallthru
      _
    // Predicated region
    $region10: #{tpu_custom_call.1} parent=1 // pred_check
      _
    $region11: #{tpu_custom_call.1} parent=1 // pred_check_branch
      %33 = sbr.rel (0) target = $region13
    $region12: #{tpu_custom_call.1} parent=1 // pred_region
      _
    $region13: #{tpu_custom_call.1} parent=1 // pred_fallthru
      _
    // Predicated region
    $region14: #{tpu_custom_call.1} parent=1 // pred_check
      _
    $region15: #{tpu_custom_call.1} parent=1 // pred_check_branch
      %35 = sbr.rel (0) target = $region17
    $region16: #{tpu_custom_call.1} parent=1 // pred_region
      %37 = vsyncadd [#allocation8], 0
      %s38 = sshll.u32 %s3, 4
      %s39 = int_to_ptr.hbm [resolvable:$true] %s38
      %s40 = sshll.u32 [#allocation7], 4
      %s41 = int_to_ptr.vmem [resolvable:$true] %s40
      %46 = dma.hbm_to_vmem [thread:$0]  %s39, 2048, %s41, [#allocation8], 256, 256, 16
    $region17: #{tpu_custom_call.1} parent=1 // pred_fallthru
      _
    // Predicated region
    $region18: #{tpu_custom_call.1} parent=1 // pred_check
      _
    $region19: #{tpu_custom_call.1} parent=1 // pred_check_branch
      %48 = sbr.rel (0) target = $region21
    $region20: #{tpu_custom_call.1} parent=1 // pred_region
      _
    $region21: #{tpu_custom_call.1} parent=1 // pred_fallthru
      _
    // Predicated region
    $region22: #{tpu_custom_call.1} parent=1 // pred_check
      _
    $region23: #{tpu_custom_call.1} parent=1 // pred_check_branch
      %50 = sbr.rel (0) target = $region25
    $region24: #{tpu_custom_call.1} parent=1 // pred_region
      %52 = vsyncadd [#allocation8], 0
      %s53 = sshll.u32 %s5, 4
      %s54 = int_to_ptr.hbm [resolvable:$true] %s53
      %s55 = sshll.u32 [#allocation9], 4
      %s56 = int_to_ptr.vmem [resolvable:$true] %s55
      %61 = dma.hbm_to_vmem [thread:$0]  %s54, 512, %s56, [#allocation8], 128, 128, 8
    $region25: #{tpu_custom_call.1} parent=1 // pred_fallthru
      _
    // Predicated region
    $region26: #{tpu_custom_call.1} parent=1 // pred_check
      _
    $region27: #{tpu_custom_call.1} parent=1 // pred_check_branch
      %63 = sbr.rel (0) target = $region29
    $region28: #{tpu_custom_call.1} parent=1 // pred_region
      %65 = vsyncadd [#allocation11], 0
      %s66 = sshll.u32 %s6, 4
      %s67 = int_to_ptr.hbm [resolvable:$true] %s66
      %s68 = sshll.u32 [#allocation10], 4
      %s69 = int_to_ptr.vmem [resolvable:$true] %s68
      %74 = dma.hbm_to_vmem [thread:$0]  %s67, 512, %s69, [#allocation11], 128, 128, 8
    $region29: #{tpu_custom_call.1} parent=1 // pred_fallthru
      _
    // Predicated region
    $region30: #{tpu_custom_call.1} parent=1 // pred_check
      _
    $region31: #{tpu_custom_call.1} parent=1 // pred_check_branch
      %76 = sbr.rel (0) target = $region33
    $region32: #{tpu_custom_call.1} parent=1 // pred_region
      _
    $region33: #{tpu_custom_call.1} parent=1 // pred_fallthru
      _
    // Predicated region
    $region34: #{tpu_custom_call.1} parent=1 // pred_check
      _
    $region35: #{tpu_custom_call.1} parent=1 // pred_check_branch
      %78 = sbr.rel (0) target = $region37
    $region36: #{tpu_custom_call.1} parent=1 // pred_region
      %80 = dma.done [#allocation5], 1024
    $region37: #{tpu_custom_call.1} parent=1 // pred_fallthru
      _
    // Predicated region
    $region38: #{tpu_custom_call.1} parent=1 // pred_check
      _
    $region39: #{tpu_custom_call.1} parent=1 // pred_check_branch
      %82 = sbr.rel (0) target = $region41
    $region40: #{tpu_custom_call.1} parent=1 // pred_region
      %84 = dma.done [#allocation8], 2048
    $region41: #{tpu_custom_call.1} parent=1 // pred_fallthru
      _
    // Predicated region
    $region42: #{tpu_custom_call.1} parent=1 // pred_check
      _
    $region43: #{tpu_custom_call.1} parent=1 // pred_check_branch
      %86 = sbr.rel (0) target = $region45
    $region44: #{tpu_custom_call.1} parent=1 // pred_region
      %88 = dma.done [#allocation8], 512
    $region45: #{tpu_custom_call.1} parent=1 // pred_fallthru
      _
    // Predicated region
    $region46: #{tpu_custom_call.1} parent=1 // pred_check
      _
    $region47: #{tpu_custom_call.1} parent=1 // pred_check_branch
      %90 = sbr.rel (0) target = $region49
    $region48: #{tpu_custom_call.1} parent=1 // pred_region
      %92 = dma.done [#allocation11], 512
    $region49: #{tpu_custom_call.1} parent=1 // pred_fallthru
      _
    %v93 = vld [vmem:[%s0] sm:$0xff]
    %v94 = vlaneseq
    %v95 = vand.u32 %v94, 127
    %vm96 = vcmp.lt.s32.totalorder %v95, 16
    %v97 = vadd.s32 %v93, 16
    %98 = vset.pattern.permute.xlu0 0
    %99 = vperm.xlu0 %98, %v93
    %v100 = vpop.permute.xlu0 %99
    %101 = vset.pattern.permute.xlu0 1
    %102 = vperm.xlu0 %101, %v97
    %v103 = vpop.permute.xlu0 %102
    %v104 = vsel %vm96, %v100, %v103
    %vm105 = vcmp.eq.s32.totalorder %v95, %v104
    %v106 = vsel %vm105, 1, 0
    %v107 = vcvt.s32.f32 %v106
    %v108 = vld [vmem:[#allocation4] sm:$0xff]
    %v109 = vld [vmem:[#allocation4 + $0x8] sm:$0xff]
    %v110 = vld [vmem:[#allocation4 + $0x10] sm:$0xff]
    %v111 = vld [vmem:[#allocation4 + $0x18] sm:$0xff]
    %v112 = vld [vmem:[#allocation4 + $0x20] sm:$0xff]
    %v113 = vld [vmem:[#allocation4 + $0x28] sm:$0xff]
    %v114 = vld [vmem:[#allocation4 + $0x30] sm:$0xff]
    %v115 = vld [vmem:[#allocation4 + $0x38] sm:$0xff]
    %v116 = vld [vmem:[%s2] sm:$0x3]
    %v118 = vperm.slane %v116, 0
    %v119 = vperm.slane %v116, 1
    %vm122 = vcmask 261120
    %v124 = vsel %vm122, %v107, 0
    %126 = vmatpush.msra.mxu0 0.0
    %127 = vmatpush.msra.mxu0 0.0
    %128 = vmatpush.msra.mxu0 0.0
    %129 = vmatpush.msra.mxu0 0.0
    %130 = vmatpush.msra.mxu0 0.0
    %131 = vmatpush.msra.mxu0 0.0
    %132 = vmatpush.msra.mxu0 0.0
    %133 = vmatpush.msra.mxu0 0.0
    %134 = vmatpush.msra.mxu0 0.0
    %135 = vmatpush.msra.mxu0 0.0
    %136 = vmatpush.msra.mxu0 0.0
    %137 = vmatpush.msra.mxu0 0.0
    %138 = vmatpush.msra.mxu0 %v114
    %139 = vmatpush.msra.mxu0 %v112
    %140 = vmatpush.msra.mxu0 %v110
    %141 = vmatpush.msra.mxu0 %v108
    %142 = vmatmul.f32.gmra.mxu0 %v124
    %v143 = vpop.f32.mrf.mxu0
    %v144 = vadd.f32 %v118, %v143
    %145 = vdwg.mxu0
    %146 = vmatpush.msra.mxu0 0.0
    %147 = vmatpush.msra.mxu0 0.0
    %148 = vmatpush.msra.mxu0 0.0
    %149 = vmatpush.msra.mxu0 0.0
    %150 = vmatpush.msra.mxu0 0.0
    %151 = vmatpush.msra.mxu0 0.0
    %152 = vmatpush.msra.mxu0 0.0
    %153 = vmatpush.msra.mxu0 0.0
    %154 = vmatpush.msra.mxu0 0.0
    %155 = vmatpush.msra.mxu0 0.0
    %156 = vmatpush.msra.mxu0 0.0
    %157 = vmatpush.msra.mxu0 0.0
    %158 = vmatpush.msra.mxu0 %v115
    %159 = vmatpush.msra.mxu0 %v113
    %160 = vmatpush.msra.mxu0 %v111
    %161 = vmatpush.msra.mxu0 %v109
    %162 = vmatmul.f32.gmra.mxu0 %v124
    %v163 = vpop.f32.mrf.mxu0
    %v164 = vadd.f32 %v119, %v163
    %165 = vdwg.mxu0
    %166 = vst [vmem:[#allocation2] sm:$0xff] %v144
    %167 = vst [vmem:[#allocation2 + $0x8] sm:$0xff] %v164
    %v168 = vld [vmem:[#allocation2] ss:$8 sm:$0x3]
    %v169 = vld [vmem:[#allocation7] sm:$0xff]
    %v170 = vld [vmem:[#allocation7 + $0x8] sm:$0xff]
    %v171 = vld [vmem:[#allocation7 + $0x10] sm:$0xff]
    %v172 = vld [vmem:[#allocation7 + $0x18] sm:$0xff]
    %v173 = vld [vmem:[#allocation7 + $0x20] sm:$0xff]
    %v174 = vld [vmem:[#allocation7 + $0x28] sm:$0xff]
    %v175 = vld [vmem:[#allocation7 + $0x30] sm:$0xff]
    %v176 = vld [vmem:[#allocation7 + $0x38] sm:$0xff]
    %v177 = vld [vmem:[#allocation7 + $0x40] sm:$0xff]
    %v178 = vld [vmem:[#allocation7 + $0x48] sm:$0xff]
    %v179 = vld [vmem:[#allocation7 + $0x50] sm:$0xff]
    %v180 = vld [vmem:[#allocation7 + $0x58] sm:$0xff]
    %v181 = vld [vmem:[#allocation7 + $0x60] sm:$0xff]
    %v182 = vld [vmem:[#allocation7 + $0x68] sm:$0xff]
    %v183 = vld [vmem:[#allocation7 + $0x70] sm:$0xff]
    %v184 = vld [vmem:[#allocation7 + $0x78] sm:$0xff]
    %vm185 = vcmask 523264
    %v187 = vsel %vm185, 0.0, 0
    %189 = vmatpush.msra.mxu0 0.0
    %190 = vmatpush.msra.mxu0 0.0
    %191 = vmatpush.msra.mxu0 0.0
    %192 = vmatpush.msra.mxu0 0.0
    %193 = vmatpush.msra.mxu0 0.0
    %194 = vmatpush.msra.mxu0 0.0
    %195 = vmatpush.msra.mxu0 0.0
    %196 = vmatpush.msra.mxu0 0.0
    %197 = vmatpush.msra.mxu0 %v183
    %198 = vmatpush.msra.mxu0 %v181
    %199 = vmatpush.msra.mxu0 %v179
    %200 = vmatpush.msra.mxu0 %v177
    %201 = vmatpush.msra.mxu0 %v175
    %202 = vmatpush.msra.mxu0 %v173
    %203 = vmatpush.msra.mxu0 %v171
    %204 = vmatpush.msra.mxu0 %v169
    %205 = vmatmul.f32.gmra.mxu0 %v187
    %v206 = vpop.f32.mrf.mxu0
    %v207 = vadd.f32 0.0, %v206
    %208 = vdwg.mxu0
    %209 = vmatpush.msra.mxu0 0.0
    %210 = vmatpush.msra.mxu0 0.0
    %211 = vmatpush.msra.mxu0 0.0
    %212 = vmatpush.msra.mxu0 0.0
    %213 = vmatpush.msra.mxu0 0.0
    %214 = vmatpush.msra.mxu0 0.0
    %215 = vmatpush.msra.mxu0 0.0
    %216 = vmatpush.msra.mxu0 0.0
    %217 = vmatpush.msra.mxu0 %v184
    %218 = vmatpush.msra.mxu0 %v182
    %219 = vmatpush.msra.mxu0 %v180
    %220 = vmatpush.msra.mxu0 %v178
    %221 = vmatpush.msra.mxu0 %v176
    %222 = vmatpush.msra.mxu0 %v174
    %223 = vmatpush.msra.mxu0 %v172
    %224 = vmatpush.msra.mxu0 %v170
    %225 = vmatmul.f32.gmra.mxu0 %v187
    %v226 = vpop.f32.mrf.mxu0
    %v227 = vadd.f32 0.0, %v226
    %228 = vdwg.mxu0
    %v231 = vrot.slane %v227, 7
    %vm232 = vcmask 1040384
    %v233 = vsel %vm232, %v207, %v231
    %v235 = vadd.f32 %v168, %v233
    %v236 = vxor.u32 %v235, 2147483648
    %v237 = vmul.f32 %v236, 1.442695
    %v238 = vpow.pop %v237
    %v239 = vadd.f32 %v238, 1.0
    %v240 = vrcp.pop %v239
    %v241 = vmul.f32 %v239, %v240
    %v242 = vsub.f32 1.0, %v241
    %v243 = vmul.f32 %v240, %v242
    %v244 = vadd.f32 %v240, %v243
    %vm245 = vweird.f32 %v239
    %vm246 = vweird.f32 %v240
    %vm247 = vmor %vm245, %vm246
    %v248 = vsel %vm247, %v240, %v244
    %v249 = vand.u32 2147483647, %v239
    %vm250 = vcmp.eq.f32.partialorder %v249, 8.507059e+37
    %v251 = vand.u32 %v239, 2147483648
    %v252 = vor.u32 1.1754944e-38, %v251
    %v253 = vsel %vm250, %v252, %v248
    %v254 = vmul.f32 1.0, %v253
    %v256 = vrot.slane %v235, 1
    %v258 = vtanh.pop %v256
    %259 = vrot.lane.b32.xlu0 %v235, 64
    %v260 = vpop.permute.xlu0 %259
    %v261 = vrot.slane %v260, 1
    %v263 = vxor.u32 %v261, 2147483648
    %v264 = vmul.f32 %v263, 1.442695
    %v265 = vpow.pop %v264
    %v266 = vadd.f32 %v265, 1.0
    %v267 = vrcp.pop %v266
    %v268 = vmul.f32 %v266, %v267
    %v269 = vsub.f32 1.0, %v268
    %v270 = vmul.f32 %v267, %v269
    %v271 = vadd.f32 %v267, %v270
    %vm272 = vweird.f32 %v266
    %vm273 = vweird.f32 %v267
    %vm274 = vmor %vm272, %vm273
    %v275 = vsel %vm274, %v267, %v271
    %v276 = vand.u32 2147483647, %v266
    %vm277 = vcmp.eq.f32.partialorder %v276, 8.507059e+37
    %v278 = vand.u32 %v266, 2147483648
    %v279 = vor.u32 1.1754944e-38, %v278
    %v280 = vsel %vm277, %v279, %v275
    %v281 = vmul.f32 1.0, %v280
    %v282 = vmul.f32 %v254, 0.0
    %v283 = vmul.f32 %v254, %v258
    %285 = vrot.lane.b32.xlu0 %v283, 64
    %v286 = vpop.permute.xlu0 %285
    %v288 = vadd.f32 %v282, %v286
    %v289 = vtanh.pop %v288
    %291 = vrot.lane.b32.xlu0 %v289, 64
    %v292 = vpop.permute.xlu0 %291
    %v294 = vmul.f32 %v281, %v292
    %vm295 = vcmask 516096
    %296 = vst.msk [vmem:[#allocation3] sm:$0x1] %vm295, %v294
    %s297 = scalar_lea.vmem [#allocation2], 1
    %v298 = vld [vmem:[%s297] ss:$8 sm:$0x3]
    %v299 = vld [vmem:[#allocation7] sm:$0xff]
    %v300 = vld [vmem:[#allocation7 + $0x8] sm:$0xff]
    %v301 = vld [vmem:[#allocation7 + $0x10] sm:$0xff]
    %v302 = vld [vmem:[#allocation7 + $0x18] sm:$0xff]
    %v303 = vld [vmem:[#allocation7 + $0x20] sm:$0xff]
    %v304 = vld [vmem:[#allocation7 + $0x28] sm:$0xff]
    %v305 = vld [vmem:[#allocation7 + $0x30] sm:$0xff]
    %v306 = vld [vmem:[#allocation7 + $0x38] sm:$0xff]
    %v307 = vld [vmem:[#allocation7 + $0x40] sm:$0xff]
    %v308 = vld [vmem:[#allocation7 + $0x48] sm:$0xff]
    %v309 = vld [vmem:[#allocation7 + $0x50] sm:$0xff]
    %v310 = vld [vmem:[#allocation7 + $0x58] sm:$0xff]
    %v311 = vld [vmem:[#allocation7 + $0x60] sm:$0xff]
    %v312 = vld [vmem:[#allocation7 + $0x68] sm:$0xff]
    %v313 = vld [vmem:[#allocation7 + $0x70] sm:$0xff]
    %v314 = vld [vmem:[#allocation7 + $0x78] sm:$0xff]
    %v316 = vsel %vm185, %v294, 0
    %318 = vmatpush.msra.mxu0 0.0
    %319 = vmatpush.msra.mxu0 0.0
    %320 = vmatpush.msra.mxu0 0.0
    %321 = vmatpush.msra.mxu0 0.0
    %322 = vmatpush.msra.mxu0 0.0
    %323 = vmatpush.msra.mxu0 0.0
    %324 = vmatpush.msra.mxu0 0.0
    %325 = vmatpush.msra.mxu0 0.0
    %326 = vmatpush.msra.mxu0 %v313
    %327 = vmatpush.msra.mxu0 %v311
    %328 = vmatpush.msra.mxu0 %v309
    %329 = vmatpush.msra.mxu0 %v307
    %330 = vmatpush.msra.mxu0 %v305
    %331 = vmatpush.msra.mxu0 %v303
    %332 = vmatpush.msra.mxu0 %v301
    %333 = vmatpush.msra.mxu0 %v299
    %334 = vmatmul.f32.gmra.mxu0 %v316
    %v335 = vpop.f32.mrf.mxu0
    %v336 = vadd.f32 0.0, %v335
    %337 = vdwg.mxu0
    %338 = vmatpush.msra.mxu0 0.0
    %339 = vmatpush.msra.mxu0 0.0
    %340 = vmatpush.msra.mxu0 0.0
    %341 = vmatpush.msra.mxu0 0.0
    %342 = vmatpush.msra.mxu0 0.0
    %343 = vmatpush.msra.mxu0 0.0
    %344 = vmatpush.msra.mxu0 0.0
    %345 = vmatpush.msra.mxu0 0.0
    %346 = vmatpush.msra.mxu0 %v314
    %347 = vmatpush.msra.mxu0 %v312
    %348 = vmatpush.msra.mxu0 %v310
    %349 = vmatpush.msra.mxu0 %v308
    %350 = vmatpush.msra.mxu0 %v306
    %351 = vmatpush.msra.mxu0 %v304
    %352 = vmatpush.msra.mxu0 %v302
    %353 = vmatpush.msra.mxu0 %v300
    %354 = vmatmul.f32.gmra.mxu0 %v316
    %v355 = vpop.f32.mrf.mxu0
    %v356 = vadd.f32 0.0, %v355
    %357 = vdwg.mxu0
    %v360 = vrot.slane %v356, 7
    %v361 = vsel %vm232, %v336, %v360
    %v363 = vadd.f32 %v298, %v361
    %v364 = vxor.u32 %v363, 2147483648
    %v365 = vmul.f32 %v364, 1.442695
    %v366 = vpow.pop %v365
    %v367 = vadd.f32 %v366, 1.0
    %v368 = vrcp.pop %v367
    %v369 = vmul.f32 %v367, %v368
    %v370 = vsub.f32 1.0, %v369
    %v371 = vmul.f32 %v368, %v370
    %v372 = vadd.f32 %v368, %v371
    %vm373 = vweird.f32 %v367
    %vm374 = vweird.f32 %v368
    %vm375 = vmor %vm373, %vm374
    %v376 = vsel %vm375, %v368, %v372
    %v377 = vand.u32 2147483647, %v367
    %vm378 = vcmp.eq.f32.partialorder %v377, 8.507059e+37
    %v379 = vand.u32 %v367, 2147483648
    %v380 = vor.u32 1.1754944e-38, %v379
    %v381 = vsel %vm378, %v380, %v376
    %v382 = vmul.f32 1.0, %v381
    %v384 = vrot.slane %v363, 1
    %v386 = vtanh.pop %v384
    %387 = vrot.lane.b32.xlu0 %v363, 64
    %v388 = vpop.permute.xlu0 %387
    %v389 = vrot.slane %v388, 1
    %v391 = vxor.u32 %v389, 2147483648
    %v392 = vmul.f32 %v391, 1.442695
    %v393 = vpow.pop %v392
    %v394 = vadd.f32 %v393, 1.0
    %v395 = vrcp.pop %v394
    %v396 = vmul.f32 %v394, %v395
    %v397 = vsub.f32 1.0, %v396
    %v398 = vmul.f32 %v395, %v397
    %v399 = vadd.f32 %v395, %v398
    %vm400 = vweird.f32 %v394
    %vm401 = vweird.f32 %v395
    %vm402 = vmor %vm400, %vm401
    %v403 = vsel %vm402, %v395, %v399
    %v404 = vand.u32 2147483647, %v394
    %vm405 = vcmp.eq.f32.partialorder %v404, 8.507059e+37
    %v406 = vand.u32 %v394, 2147483648
    %v407 = vor.u32 1.1754944e-38, %v406
    %v408 = vsel %vm405, %v407, %v403
    %v409 = vmul.f32 1.0, %v408
    %v410 = vmul.f32 %v382, %v288
    %v411 = vmul.f32 %v382, %v386
    %413 = vrot.lane.b32.xlu0 %v411, 64
    %v414 = vpop.permute.xlu0 %413
    %v416 = vadd.f32 %v410, %v414
    %v417 = vtanh.pop %v416
    %419 = vrot.lane.b32.xlu0 %v417, 64
    %v420 = vpop.permute.xlu0 %419
    %v422 = vmul.f32 %v409, %v420
    %423 = vst.msk [vmem:[#allocation3 + $0x1] sm:$0x1] %vm295, %v422
    %s424 = scalar_lea.vmem [#allocation2], 2
    %v425 = vld [vmem:[%s424] ss:$8 sm:$0x3]
    %v426 = vld [vmem:[#allocation7] sm:$0xff]
    %v427 = vld [vmem:[#allocation7 + $0x8] sm:$0xff]
    %v428 = vld [vmem:[#allocation7 + $0x10] sm:$0xff]
    %v429 = vld [vmem:[#allocation7 + $0x18] sm:$0xff]
    %v430 = vld [vmem:[#allocation7 + $0x20] sm:$0xff]
    %v431 = vld [vmem:[#allocation7 + $0x28] sm:$0xff]
    %v432 = vld [vmem:[#allocation7 + $0x30] sm:$0xff]
    %v433 = vld [vmem:[#allocation7 + $0x38] sm:$0xff]
    %v434 = vld [vmem:[#allocation7 + $0x40] sm:$0xff]
    %v435 = vld [vmem:[#allocation7 + $0x48] sm:$0xff]
    %v436 = vld [vmem:[#allocation7 + $0x50] sm:$0xff]
    %v437 = vld [vmem:[#allocation7 + $0x58] sm:$0xff]
    %v438 = vld [vmem:[#allocation7 + $0x60] sm:$0xff]
    %v439 = vld [vmem:[#allocation7 + $0x68] sm:$0xff]
    %v440 = vld [vmem:[#allocation7 + $0x70] sm:$0xff]
    %v441 = vld [vmem:[#allocation7 + $0x78] sm:$0xff]
    %v443 = vsel %vm185, %v422, 0
    %445 = vmatpush.msra.mxu0 0.0
    %446 = vmatpush.msra.mxu0 0.0
    %447 = vmatpush.msra.mxu0 0.0
    %448 = vmatpush.msra.mxu0 0.0
    %449 = vmatpush.msra.mxu0 0.0
    %450 = vmatpush.msra.mxu0 0.0
    %451 = vmatpush.msra.mxu0 0.0
    %452 = vmatpush.msra.mxu0 0.0
    %453 = vmatpush.msra.mxu0 %v440
    %454 = vmatpush.msra.mxu0 %v438
    %455 = vmatpush.msra.mxu0 %v436
    %456 = vmatpush.msra.mxu0 %v434
    %457 = vmatpush.msra.mxu0 %v432
    %458 = vmatpush.msra.mxu0 %v430
    %459 = vmatpush.msra.mxu0 %v428
    %460 = vmatpush.msra.mxu0 %v426
    %461 = vmatmul.f32.gmra.mxu0 %v443
    %v462 = vpop.f32.mrf.mxu0
    %v463 = vadd.f32 0.0, %v462
    %464 = vdwg.mxu0
    %465 = vmatpush.msra.mxu0 0.0
    %466 = vmatpush.msra.mxu0 0.0
    %467 = vmatpush.msra.mxu0 0.0
    %468 = vmatpush.msra.mxu0 0.0
    %469 = vmatpush.msra.mxu0 0.0
    %470 = vmatpush.msra.mxu0 0.0
    %471 = vmatpush.msra.mxu0 0.0
    %472 = vmatpush.msra.mxu0 0.0
    %473 = vmatpush.msra.mxu0 %v441
    %474 = vmatpush.msra.mxu0 %v439
    %475 = vmatpush.msra.mxu0 %v437
    %476 = vmatpush.msra.mxu0 %v435
    %477 = vmatpush.msra.mxu0 %v433
    %478 = vmatpush.msra.mxu0 %v431
    %479 = vmatpush.msra.mxu0 %v429
    %480 = vmatpush.msra.mxu0 %v427
    %481 = vmatmul.f32.gmra.mxu0 %v443
    %v482 = vpop.f32.mrf.mxu0
    %v483 = vadd.f32 0.0, %v482
    %484 = vdwg.mxu0
    %v487 = vrot.slane %v483, 7
    %v488 = vsel %vm232, %v463, %v487
    %v490 = vadd.f32 %v425, %v488
    %v491 = vxor.u32 %v490, 2147483648
    %v492 = vmul.f32 %v491, 1.442695
    %v493 = vpow.pop %v492
    %v494 = vadd.f32 %v493, 1.0
    %v495 = vrcp.pop %v494
    %v496 = vmul.f32 %v494, %v495
    %v497 = vsub.f32 1.0, %v496
    %v498 = vmul.f32 %v495, %v497
    %v499 = vadd.f32 %v495, %v498
    %vm500 = vweird.f32 %v494
    %vm501 = vweird.f32 %v495
    %vm502 = vmor %vm500, %vm501
    %v503 = vsel %vm502, %v495, %v499
    %v504 = vand.u32 2147483647, %v494
    %vm505 = vcmp.eq.f32.partialorder %v504, 8.507059e+37
    %v506 = vand.u32 %v494, 2147483648
    %v507 = vor.u32 1.1754944e-38, %v506
    %v508 = vsel %vm505, %v507, %v503
    %v509 = vmul.f32 1.0, %v508
    %v511 = vrot.slane %v490, 1
    %v513 = vtanh.pop %v511
    %514 = vrot.lane.b32.xlu0 %v490, 64
    %v515 = vpop.permute.xlu0 %514
    %v516 = vrot.slane %v515, 1
    %v518 = vxor.u32 %v516, 2147483648
    %v519 = vmul.f32 %v518, 1.442695
    %v520 = vpow.pop %v519
    %v521 = vadd.f32 %v520, 1.0
    %v522 = vrcp.pop %v521
    %v523 = vmul.f32 %v521, %v522
    %v524 = vsub.f32 1.0, %v523
    %v525 = vmul.f32 %v522, %v524
    %v526 = vadd.f32 %v522, %v525
    %vm527 = vweird.f32 %v521
    %vm528 = vweird.f32 %v522
    %vm529 = vmor %vm527, %vm528
    %v530 = vsel %vm529, %v522, %v526
    %v531 = vand.u32 2147483647, %v521
    %vm532 = vcmp.eq.f32.partialorder %v531, 8.507059e+37
    %v533 = vand.u32 %v521, 2147483648
    %v534 = vor.u32 1.1754944e-38, %v533
    %v535 = vsel %vm532, %v534, %v530
    %v536 = vmul.f32 1.0, %v535
    %v537 = vmul.f32 %v509, %v416
    %v538 = vmul.f32 %v509, %v513
    %540 = vrot.lane.b32.xlu0 %v538, 64
    %v541 = vpop.permute.xlu0 %540
    %v543 = vadd.f32 %v537, %v541
    %v544 = vtanh.pop %v543
    %546 = vrot.lane.b32.xlu0 %v544, 64
    %v547 = vpop.permute.xlu0 %546
    %v549 = vmul.f32 %v536, %v547
    %550 = vst.msk [vmem:[#allocation3 + $0x2] sm:$0x1] %vm295, %v549
    %s551 = scalar_lea.vmem [#allocation2], 3
    %v552 = vld [vmem:[%s551] ss:$8 sm:$0x3]
    %v553 = vld [vmem:[#allocation7] sm:$0xff]
    %v554 = vld [vmem:[#allocation7 + $0x8] sm:$0xff]
    %v555 = vld [vmem:[#allocation7 + $0x10] sm:$0xff]
    %v556 = vld [vmem:[#allocation7 + $0x18] sm:$0xff]
    %v557 = vld [vmem:[#allocation7 + $0x20] sm:$0xff]
    %v558 = vld [vmem:[#allocation7 + $0x28] sm:$0xff]
    %v559 = vld [vmem:[#allocation7 + $0x30] sm:$0xff]
    %v560 = vld [vmem:[#allocation7 + $0x38] sm:$0xff]
    %v561 = vld [vmem:[#allocation7 + $0x40] sm:$0xff]
    %v562 = vld [vmem:[#allocation7 + $0x48] sm:$0xff]
    %v563 = vld [vmem:[#allocation7 + $0x50] sm:$0xff]
    %v564 = vld [vmem:[#allocation7 + $0x58] sm:$0xff]
    %v565 = vld [vmem:[#allocation7 + $0x60] sm:$0xff]
    %v566 = vld [vmem:[#allocation7 + $0x68] sm:$0xff]
    %v567 = vld [vmem:[#allocation7 + $0x70] sm:$0xff]
    %v568 = vld [vmem:[#allocation7 + $0x78] sm:$0xff]
    %v570 = vsel %vm185, %v549, 0
    %572 = vmatpush.msra.mxu0 0.0
    %573 = vmatpush.msra.mxu0 0.0
    %574 = vmatpush.msra.mxu0 0.0
    %575 = vmatpush.msra.mxu0 0.0
    %576 = vmatpush.msra.mxu0 0.0
    %577 = vmatpush.msra.mxu0 0.0
    %578 = vmatpush.msra.mxu0 0.0
    %579 = vmatpush.msra.mxu0 0.0
    %580 = vmatpush.msra.mxu0 %v567
    %581 = vmatpush.msra.mxu0 %v565
    %582 = vmatpush.msra.mxu0 %v563
    %583 = vmatpush.msra.mxu0 %v561
    %584 = vmatpush.msra.mxu0 %v559
    %585 = vmatpush.msra.mxu0 %v557
    %586 = vmatpush.msra.mxu0 %v555
    %587 = vmatpush.msra.mxu0 %v553
    %588 = vmatmul.f32.gmra.mxu0 %v570
    %v589 = vpop.f32.mrf.mxu0
    %v590 = vadd.f32 0.0, %v589
    %591 = vdwg.mxu0
    %592 = vmatpush.msra.mxu0 0.0
    %593 = vmatpush.msra.mxu0 0.0
    %594 = vmatpush.msra.mxu0 0.0
    %595 = vmatpush.msra.mxu0 0.0
    %596 = vmatpush.msra.mxu0 0.0
    %597 = vmatpush.msra.mxu0 0.0
    %598 = vmatpush.msra.mxu0 0.0
    %599 = vmatpush.msra.mxu0 0.0
    %600 = vmatpush.msra.mxu0 %v568
    %601 = vmatpush.msra.mxu0 %v566
    %602 = vmatpush.msra.mxu0 %v564
    %603 = vmatpush.msra.mxu0 %v562
    %604 = vmatpush.msra.mxu0 %v560
    %605 = vmatpush.msra.mxu0 %v558
    %606 = vmatpush.msra.mxu0 %v556
    %607 = vmatpush.msra.mxu0 %v554
    %608 = vmatmul.f32.gmra.mxu0 %v570
    %v609 = vpop.f32.mrf.mxu0
    %v610 = vadd.f32 0.0, %v609
    %611 = vdwg.mxu0
    %v614 = vrot.slane %v610, 7
    %v615 = vsel %vm232, %v590, %v614
    %v617 = vadd.f32 %v552, %v615
    %v618 = vxor.u32 %v617, 2147483648
    %v619 = vmul.f32 %v618, 1.442695
    %v620 = vpow.pop %v619
    %v621 = vadd.f32 %v620, 1.0
    %v622 = vrcp.pop %v621
    %v623 = vmul.f32 %v621, %v622
    %v624 = vsub.f32 1.0, %v623
    %v625 = vmul.f32 %v622, %v624
    %v626 = vadd.f32 %v622, %v625
    %vm627 = vweird.f32 %v621
    %vm628 = vweird.f32 %v622
    %vm629 = vmor %vm627, %vm628
    %v630 = vsel %vm629, %v622, %v626
    %v631 = vand.u32 2147483647, %v621
    %vm632 = vcmp.eq.f32.partialorder %v631, 8.507059e+37
    %v633 = vand.u32 %v621, 2147483648
    %v634 = vor.u32 1.1754944e-38, %v633
    %v635 = vsel %vm632, %v634, %v630
    %v636 = vmul.f32 1.0, %v635
    %v638 = vrot.slane %v617, 1
    %v640 = vtanh.pop %v638
    %641 = vrot.lane.b32.xlu0 %v617, 64
    %v642 = vpop.permute.xlu0 %641
    %v643 = vrot.slane %v642, 1
    %v645 = vxor.u32 %v643, 2147483648
    %v646 = vmul.f32 %v645, 1.442695
    %v647 = vpow.pop %v646
    %v648 = vadd.f32 %v647, 1.0
    %v649 = vrcp.pop %v648
    %v650 = vmul.f32 %v648, %v649
    %v651 = vsub.f32 1.0, %v650
    %v652 = vmul.f32 %v649, %v651
    %v653 = vadd.f32 %v649, %v652
    %vm654 = vweird.f32 %v648
    %vm655 = vweird.f32 %v649
    %vm656 = vmor %vm654, %vm655
    %v657 = vsel %vm656, %v649, %v653
    %v658 = vand.u32 2147483647, %v648
    %vm659 = vcmp.eq.f32.partialorder %v658, 8.507059e+37
    %v660 = vand.u32 %v648, 2147483648
    %v661 = vor.u32 1.1754944e-38, %v660
    %v662 = vsel %vm659, %v661, %v657
    %v663 = vmul.f32 1.0, %v662
    %v664 = vmul.f32 %v636, %v543
    %v665 = vmul.f32 %v636, %v640
    %667 = vrot.lane.b32.xlu0 %v665, 64
    %v668 = vpop.permute.xlu0 %667
    %v670 = vadd.f32 %v664, %v668
    %v671 = vtanh.pop %v670
    %673 = vrot.lane.b32.xlu0 %v671, 64
    %v674 = vpop.permute.xlu0 %673
    %v676 = vmul.f32 %v663, %v674
    %677 = vst.msk [vmem:[#allocation3 + $0x3] sm:$0x1] %vm295, %v676
    %s678 = scalar_lea.vmem [#allocation2], 4
    %v679 = vld [vmem:[%s678] ss:$8 sm:$0x3]
    %v680 = vld [vmem:[#allocation7] sm:$0xff]
    %v681 = vld [vmem:[#allocation7 + $0x8] sm:$0xff]
    %v682 = vld [vmem:[#allocation7 + $0x10] sm:$0xff]
    %v683 = vld [vmem:[#allocation7 + $0x18] sm:$0xff]
    %v684 = vld [vmem:[#allocation7 + $0x20] sm:$0xff]
    %v685 = vld [vmem:[#allocation7 + $0x28] sm:$0xff]
    %v686 = vld [vmem:[#allocation7 + $0x30] sm:$0xff]
    %v687 = vld [vmem:[#allocation7 + $0x38] sm:$0xff]
    %v688 = vld [vmem:[#allocation7 + $0x40] sm:$0xff]
    %v689 = vld [vmem:[#allocation7 + $0x48] sm:$0xff]
    %v690 = vld [vmem:[#allocation7 + $0x50] sm:$0xff]
    %v691 = vld [vmem:[#allocation7 + $0x58] sm:$0xff]
    %v692 = vld [vmem:[#allocation7 + $0x60] sm:$0xff]
    %v693 = vld [vmem:[#allocation7 + $0x68] sm:$0xff]
    %v694 = vld [vmem:[#allocation7 + $0x70] sm:$0xff]
    %v695 = vld [vmem:[#allocation7 + $0x78] sm:$0xff]
    %v697 = vsel %vm185, %v676, 0
    %699 = vmatpush.msra.mxu0 0.0
    %700 = vmatpush.msra.mxu0 0.0
    %701 = vmatpush.msra.mxu0 0.0
    %702 = vmatpush.msra.mxu0 0.0
    %703 = vmatpush.msra.mxu0 0.0
    %704 = vmatpush.msra.mxu0 0.0
    %705 = vmatpush.msra.mxu0 0.0
    %706 = vmatpush.msra.mxu0 0.0
    %707 = vmatpush.msra.mxu0 %v694
    %708 = vmatpush.msra.mxu0 %v692
    %709 = vmatpush.msra.mxu0 %v690
    %710 = vmatpush.msra.mxu0 %v688
    %711 = vmatpush.msra.mxu0 %v686
    %712 = vmatpush.msra.mxu0 %v684
    %713 = vmatpush.msra.mxu0 %v682
    %714 = vmatpush.msra.mxu0 %v680
    %715 = vmatmul.f32.gmra.mxu0 %v697
    %v716 = vpop.f32.mrf.mxu0
    %v717 = vadd.f32 0.0, %v716
    %718 = vdwg.mxu0
    %719 = vmatpush.msra.mxu0 0.0
    %720 = vmatpush.msra.mxu0 0.0
    %721 = vmatpush.msra.mxu0 0.0
    %722 = vmatpush.msra.mxu0 0.0
    %723 = vmatpush.msra.mxu0 0.0
    %724 = vmatpush.msra.mxu0 0.0
    %725 = vmatpush.msra.mxu0 0.0
    %726 = vmatpush.msra.mxu0 0.0
    %727 = vmatpush.msra.mxu0 %v695
    %728 = vmatpush.msra.mxu0 %v693
    %729 = vmatpush.msra.mxu0 %v691
    %730 = vmatpush.msra.mxu0 %v689
    %731 = vmatpush.msra.mxu0 %v687
    %732 = vmatpush.msra.mxu0 %v685
    %733 = vmatpush.msra.mxu0 %v683
    %734 = vmatpush.msra.mxu0 %v681
    %735 = vmatmul.f32.gmra.mxu0 %v697
    %v736 = vpop.f32.mrf.mxu0
    %v737 = vadd.f32 0.0, %v736
    %738 = vdwg.mxu0
    %v741 = vrot.slane %v737, 7
    %v742 = vsel %vm232, %v717, %v741
    %v744 = vadd.f32 %v679, %v742
    %v745 = vxor.u32 %v744, 2147483648
    %v746 = vmul.f32 %v745, 1.442695
    %v747 = vpow.pop %v746
    %v748 = vadd.f32 %v747, 1.0
    %v749 = vrcp.pop %v748
    %v750 = vmul.f32 %v748, %v749
    %v751 = vsub.f32 1.0, %v750
    %v752 = vmul.f32 %v749, %v751
    %v753 = vadd.f32 %v749, %v752
    %vm754 = vweird.f32 %v748
    %vm755 = vweird.f32 %v749
    %vm756 = vmor %vm754, %vm755
    %v757 = vsel %vm756, %v749, %v753
    %v758 = vand.u32 2147483647, %v748
    %vm759 = vcmp.eq.f32.partialorder %v758, 8.507059e+37
    %v760 = vand.u32 %v748, 2147483648
    %v761 = vor.u32 1.1754944e-38, %v760
    %v762 = vsel %vm759, %v761, %v757
    %v763 = vmul.f32 1.0, %v762
    %v765 = vrot.slane %v744, 1
    %v767 = vtanh.pop %v765
    %768 = vrot.lane.b32.xlu0 %v744, 64
    %v769 = vpop.permute.xlu0 %768
    %v770 = vrot.slane %v769, 1
    %v772 = vxor.u32 %v770, 2147483648
    %v773 = vmul.f32 %v772, 1.442695
    %v774 = vpow.pop %v773
    %v775 = vadd.f32 %v774, 1.0
    %v776 = vrcp.pop %v775
    %v777 = vmul.f32 %v775, %v776
    %v778 = vsub.f32 1.0, %v777
    %v779 = vmul.f32 %v776, %v778
    %v780 = vadd.f32 %v776, %v779
    %vm781 = vweird.f32 %v775
    %vm782 = vweird.f32 %v776
    %vm783 = vmor %vm781, %vm782
    %v784 = vsel %vm783, %v776, %v780
    %v785 = vand.u32 2147483647, %v775
    %vm786 = vcmp.eq.f32.partialorder %v785, 8.507059e+37
    %v787 = vand.u32 %v775, 2147483648
    %v788 = vor.u32 1.1754944e-38, %v787
    %v789 = vsel %vm786, %v788, %v784
    %v790 = vmul.f32 1.0, %v789
    %v791 = vmul.f32 %v763, %v670
    %v792 = vmul.f32 %v763, %v767
    %794 = vrot.lane.b32.xlu0 %v792, 64
    %v795 = vpop.permute.xlu0 %794
    %v797 = vadd.f32 %v791, %v795
    %v798 = vtanh.pop %v797
    %800 = vrot.lane.b32.xlu0 %v798, 64
    %v801 = vpop.permute.xlu0 %800
    %v803 = vmul.f32 %v790, %v801
    %804 = vst.msk [vmem:[#allocation3 + $0x4] sm:$0x1] %vm295, %v803
    %s805 = scalar_lea.vmem [#allocation2], 5
    %v806 = vld [vmem:[%s805] ss:$8 sm:$0x3]
    %v807 = vld [vmem:[#allocation7] sm:$0xff]
    %v808 = vld [vmem:[#allocation7 + $0x8] sm:$0xff]
    %v809 = vld [vmem:[#allocation7 + $0x10] sm:$0xff]
    %v810 = vld [vmem:[#allocation7 + $0x18] sm:$0xff]
    %v811 = vld [vmem:[#allocation7 + $0x20] sm:$0xff]
    %v812 = vld [vmem:[#allocation7 + $0x28] sm:$0xff]
    %v813 = vld [vmem:[#allocation7 + $0x30] sm:$0xff]
    %v814 = vld [vmem:[#allocation7 + $0x38] sm:$0xff]
    %v815 = vld [vmem:[#allocation7 + $0x40] sm:$0xff]
    %v816 = vld [vmem:[#allocation7 + $0x48] sm:$0xff]
    %v817 = vld [vmem:[#allocation7 + $0x50] sm:$0xff]
    %v818 = vld [vmem:[#allocation7 + $0x58] sm:$0xff]
    %v819 = vld [vmem:[#allocation7 + $0x60] sm:$0xff]
    %v820 = vld [vmem:[#allocation7 + $0x68] sm:$0xff]
    %v821 = vld [vmem:[#allocation7 + $0x70] sm:$0xff]
    %v822 = vld [vmem:[#allocation7 + $0x78] sm:$0xff]
    %v824 = vsel %vm185, %v803, 0
    %826 = vmatpush.msra.mxu0 0.0
    %827 = vmatpush.msra.mxu0 0.0
    %828 = vmatpush.msra.mxu0 0.0
    %829 = vmatpush.msra.mxu0 0.0
    %830 = vmatpush.msra.mxu0 0.0
    %831 = vmatpush.msra.mxu0 0.0
    %832 = vmatpush.msra.mxu0 0.0
    %833 = vmatpush.msra.mxu0 0.0
    %834 = vmatpush.msra.mxu0 %v821
    %835 = vmatpush.msra.mxu0 %v819
    %836 = vmatpush.msra.mxu0 %v817
    %837 = vmatpush.msra.mxu0 %v815
    %838 = vmatpush.msra.mxu0 %v813
    %839 = vmatpush.msra.mxu0 %v811
    %840 = vmatpush.msra.mxu0 %v809
    %841 = vmatpush.msra.mxu0 %v807
    %842 = vmatmul.f32.gmra.mxu0 %v824
    %v843 = vpop.f32.mrf.mxu0
    %v844 = vadd.f32 0.0, %v843
    %845 = vdwg.mxu0
    %846 = vmatpush.msra.mxu0 0.0
    %847 = vmatpush.msra.mxu0 0.0
    %848 = vmatpush.msra.mxu0 0.0
    %849 = vmatpush.msra.mxu0 0.0
    %850 = vmatpush.msra.mxu0 0.0
    %851 = vmatpush.msra.mxu0 0.0
    %852 = vmatpush.msra.mxu0 0.0
    %853 = vmatpush.msra.mxu0 0.0
    %854 = vmatpush.msra.mxu0 %v822
    %855 = vmatpush.msra.mxu0 %v820
    %856 = vmatpush.msra.mxu0 %v818
    %857 = vmatpush.msra.mxu0 %v816
    %858 = vmatpush.msra.mxu0 %v814
    %859 = vmatpush.msra.mxu0 %v812
    %860 = vmatpush.msra.mxu0 %v810
    %861 = vmatpush.msra.mxu0 %v808
    %862 = vmatmul.f32.gmra.mxu0 %v824
    %v863 = vpop.f32.mrf.mxu0
    %v864 = vadd.f32 0.0, %v863
    %865 = vdwg.mxu0
    %v868 = vrot.slane %v864, 7
    %v869 = vsel %vm232, %v844, %v868
    %v871 = vadd.f32 %v806, %v869
    %v872 = vxor.u32 %v871, 2147483648
    %v873 = vmul.f32 %v872, 1.442695
    %v874 = vpow.pop %v873
    %v875 = vadd.f32 %v874, 1.0
    %v876 = vrcp.pop %v875
    %v877 = vmul.f32 %v875, %v876
    %v878 = vsub.f32 1.0, %v877
    %v879 = vmul.f32 %v876, %v878
    %v880 = vadd.f32 %v876, %v879
    %vm881 = vweird.f32 %v875
    %vm882 = vweird.f32 %v876
    %vm883 = vmor %vm881, %vm882
    %v884 = vsel %vm883, %v876, %v880
    %v885 = vand.u32 2147483647, %v875
    %vm886 = vcmp.eq.f32.partialorder %v885, 8.507059e+37
    %v887 = vand.u32 %v875, 2147483648
    %v888 = vor.u32 1.1754944e-38, %v887
    %v889 = vsel %vm886, %v888, %v884
    %v890 = vmul.f32 1.0, %v889
    %v892 = vrot.slane %v871, 1
    %v894 = vtanh.pop %v892
    %895 = vrot.lane.b32.xlu0 %v871, 64
    %v896 = vpop.permute.xlu0 %895
    %v897 = vrot.slane %v896, 1
    %v899 = vxor.u32 %v897, 2147483648
    %v900 = vmul.f32 %v899, 1.442695
    %v901 = vpow.pop %v900
    %v902 = vadd.f32 %v901, 1.0
    %v903 = vrcp.pop %v902
    %v904 = vmul.f32 %v902, %v903
    %v905 = vsub.f32 1.0, %v904
    %v906 = vmul.f32 %v903, %v905
    %v907 = vadd.f32 %v903, %v906
    %vm908 = vweird.f32 %v902
    %vm909 = vweird.f32 %v903
    %vm910 = vmor %vm908, %vm909
    %v911 = vsel %vm910, %v903, %v907
    %v912 = vand.u32 2147483647, %v902
    %vm913 = vcmp.eq.f32.partialorder %v912, 8.507059e+37
    %v914 = vand.u32 %v902, 2147483648
    %v915 = vor.u32 1.1754944e-38, %v914
    %v916 = vsel %vm913, %v915, %v911
    %v917 = vmul.f32 1.0, %v916
    %v918 = vmul.f32 %v890, %v797
    %v919 = vmul.f32 %v890, %v894
    %921 = vrot.lane.b32.xlu0 %v919, 64
    %v922 = vpop.permute.xlu0 %921
    %v924 = vadd.f32 %v918, %v922
    %v925 = vtanh.pop %v924
    %927 = vrot.lane.b32.xlu0 %v925, 64
    %v928 = vpop.permute.xlu0 %927
    %v930 = vmul.f32 %v917, %v928
    %931 = vst.msk [vmem:[#allocation3 + $0x5] sm:$0x1] %vm295, %v930
    %s932 = scalar_lea.vmem [#allocation2], 6
    %v933 = vld [vmem:[%s932] ss:$8 sm:$0x3]
    %v934 = vld [vmem:[#allocation7] sm:$0xff]
    %v935 = vld [vmem:[#allocation7 + $0x8] sm:$0xff]
    %v936 = vld [vmem:[#allocation7 + $0x10] sm:$0xff]
    %v937 = vld [vmem:[#allocation7 + $0x18] sm:$0xff]
    %v938 = vld [vmem:[#allocation7 + $0x20] sm:$0xff]
    %v939 = vld [vmem:[#allocation7 + $0x28] sm:$0xff]
    %v940 = vld [vmem:[#allocation7 + $0x30] sm:$0xff]
    %v941 = vld [vmem:[#allocation7 + $0x38] sm:$0xff]
    %v942 = vld [vmem:[#allocation7 + $0x40] sm:$0xff]
    %v943 = vld [vmem:[#allocation7 + $0x48] sm:$0xff]
    %v944 = vld [vmem:[#allocation7 + $0x50] sm:$0xff]
    %v945 = vld [vmem:[#allocation7 + $0x58] sm:$0xff]
    %v946 = vld [vmem:[#allocation7 + $0x60] sm:$0xff]
    %v947 = vld [vmem:[#allocation7 + $0x68] sm:$0xff]
    %v948 = vld [vmem:[#allocation7 + $0x70] sm:$0xff]
    %v949 = vld [vmem:[#allocation7 + $0x78] sm:$0xff]
    %v951 = vsel %vm185, %v930, 0
    %953 = vmatpush.msra.mxu0 0.0
    %954 = vmatpush.msra.mxu0 0.0
    %955 = vmatpush.msra.mxu0 0.0
    %956 = vmatpush.msra.mxu0 0.0
    %957 = vmatpush.msra.mxu0 0.0
    %958 = vmatpush.msra.mxu0 0.0
    %959 = vmatpush.msra.mxu0 0.0
    %960 = vmatpush.msra.mxu0 0.0
    %961 = vmatpush.msra.mxu0 %v948
    %962 = vmatpush.msra.mxu0 %v946
    %963 = vmatpush.msra.mxu0 %v944
    %964 = vmatpush.msra.mxu0 %v942
    %965 = vmatpush.msra.mxu0 %v940
    %966 = vmatpush.msra.mxu0 %v938
    %967 = vmatpush.msra.mxu0 %v936
    %968 = vmatpush.msra.mxu0 %v934
    %969 = vmatmul.f32.gmra.mxu0 %v951
    %v970 = vpop.f32.mrf.mxu0
    %v971 = vadd.f32 0.0, %v970
    %972 = vdwg.mxu0
    %973 = vmatpush.msra.mxu0 0.0
    %974 = vmatpush.msra.mxu0 0.0
    %975 = vmatpush.msra.mxu0 0.0
    %976 = vmatpush.msra.mxu0 0.0
    %977 = vmatpush.msra.mxu0 0.0
    %978 = vmatpush.msra.mxu0 0.0
    %979 = vmatpush.msra.mxu0 0.0
    %980 = vmatpush.msra.mxu0 0.0
    %981 = vmatpush.msra.mxu0 %v949
    %982 = vmatpush.msra.mxu0 %v947
    %983 = vmatpush.msra.mxu0 %v945
    %984 = vmatpush.msra.mxu0 %v943
    %985 = vmatpush.msra.mxu0 %v941
    %986 = vmatpush.msra.mxu0 %v939
    %987 = vmatpush.msra.mxu0 %v937
    %988 = vmatpush.msra.mxu0 %v935
    %989 = vmatmul.f32.gmra.mxu0 %v951
    %v990 = vpop.f32.mrf.mxu0
    %v991 = vadd.f32 0.0, %v990
    %992 = vdwg.mxu0
    %v995 = vrot.slane %v991, 7
    %v996 = vsel %vm232, %v971, %v995
    %v998 = vadd.f32 %v933, %v996
    %v999 = vxor.u32 %v998, 2147483648
    %v1000 = vmul.f32 %v999, 1.442695
    %v1001 = vpow.pop %v1000
    %v1002 = vadd.f32 %v1001, 1.0
    %v1003 = vrcp.pop %v1002
    %v1004 = vmul.f32 %v1002, %v1003
    %v1005 = vsub.f32 1.0, %v1004
    %v1006 = vmul.f32 %v1003, %v1005
    %v1007 = vadd.f32 %v1003, %v1006
    %vm1008 = vweird.f32 %v1002
    %vm1009 = vweird.f32 %v1003
    %vm1010 = vmor %vm1008, %vm1009
    %v1011 = vsel %vm1010, %v1003, %v1007
    %v1012 = vand.u32 2147483647, %v1002
    %vm1013 = vcmp.eq.f32.partialorder %v1012, 8.507059e+37
    %v1014 = vand.u32 %v1002, 2147483648
    %v1015 = vor.u32 1.1754944e-38, %v1014
    %v1016 = vsel %vm1013, %v1015, %v1011
    %v1017 = vmul.f32 1.0, %v1016
    %v1019 = vrot.slane %v998, 1
    %v1021 = vtanh.pop %v1019
    %1022 = vrot.lane.b32.xlu0 %v998, 64
    %v1023 = vpop.permute.xlu0 %1022
    %v1024 = vrot.slane %v1023, 1
    %v1026 = vxor.u32 %v1024, 2147483648
    %v1027 = vmul.f32 %v1026, 1.442695
    %v1028 = vpow.pop %v1027
    %v1029 = vadd.f32 %v1028, 1.0
    %v1030 = vrcp.pop %v1029
    %v1031 = vmul.f32 %v1029, %v1030
    %v1032 = vsub.f32 1.0, %v1031
    %v1033 = vmul.f32 %v1030, %v1032
    %v1034 = vadd.f32 %v1030, %v1033
    %vm1035 = vweird.f32 %v1029
    %vm1036 = vweird.f32 %v1030
    %vm1037 = vmor %vm1035, %vm1036
    %v1038 = vsel %vm1037, %v1030, %v1034
    %v1039 = vand.u32 2147483647, %v1029
    %vm1040 = vcmp.eq.f32.partialorder %v1039, 8.507059e+37
    %v1041 = vand.u32 %v1029, 2147483648
    %v1042 = vor.u32 1.1754944e-38, %v1041
    %v1043 = vsel %vm1040, %v1042, %v1038
    %v1044 = vmul.f32 1.0, %v1043
    %v1045 = vmul.f32 %v1017, %v924
    %v1046 = vmul.f32 %v1017, %v1021
    %1048 = vrot.lane.b32.xlu0 %v1046, 64
    %v1049 = vpop.permute.xlu0 %1048
    %v1051 = vadd.f32 %v1045, %v1049
    %v1052 = vtanh.pop %v1051
    %1054 = vrot.lane.b32.xlu0 %v1052, 64
    %v1055 = vpop.permute.xlu0 %1054
    %v1057 = vmul.f32 %v1044, %v1055
    %1058 = vst.msk [vmem:[#allocation3 + $0x6] sm:$0x1] %vm295, %v1057
    %s1059 = scalar_lea.vmem [#allocation2], 7
    %v1060 = vld [vmem:[%s1059] ss:$8 sm:$0x3]
    %v1061 = vld [vmem:[#allocation7] sm:$0xff]
    %v1062 = vld [vmem:[#allocation7 + $0x8] sm:$0xff]
    %v1063 = vld [vmem:[#allocation7 + $0x10] sm:$0xff]
    %v1064 = vld [vmem:[#allocation7 + $0x18] sm:$0xff]
    %v1065 = vld [vmem:[#allocation7 + $0x20] sm:$0xff]
    %v1066 = vld [vmem:[#allocation7 + $0x28] sm:$0xff]
    %v1067 = vld [vmem:[#allocation7 + $0x30] sm:$0xff]
    %v1068 = vld [vmem:[#allocation7 + $0x38] sm:$0xff]
    %v1069 = vld [vmem:[#allocation7 + $0x40] sm:$0xff]
    %v1070 = vld [vmem:[#allocation7 + $0x48] sm:$0xff]
    %v1071 = vld [vmem:[#allocation7 + $0x50] sm:$0xff]
    %v1072 = vld [vmem:[#allocation7 + $0x58] sm:$0xff]
    %v1073 = vld [vmem:[#allocation7 + $0x60] sm:$0xff]
    %v1074 = vld [vmem:[#allocation7 + $0x68] sm:$0xff]
    %v1075 = vld [vmem:[#allocation7 + $0x70] sm:$0xff]
    %v1076 = vld [vmem:[#allocation7 + $0x78] sm:$0xff]
    %v1078 = vsel %vm185, %v1057, 0
    %1080 = vmatpush.msra.mxu0 0.0
    %1081 = vmatpush.msra.mxu0 0.0
    %1082 = vmatpush.msra.mxu0 0.0
    %1083 = vmatpush.msra.mxu0 0.0
    %1084 = vmatpush.msra.mxu0 0.0
    %1085 = vmatpush.msra.mxu0 0.0
    %1086 = vmatpush.msra.mxu0 0.0
    %1087 = vmatpush.msra.mxu0 0.0
    %1088 = vmatpush.msra.mxu0 %v1075
    %1089 = vmatpush.msra.mxu0 %v1073
    %1090 = vmatpush.msra.mxu0 %v1071
    %1091 = vmatpush.msra.mxu0 %v1069
    %1092 = vmatpush.msra.mxu0 %v1067
    %1093 = vmatpush.msra.mxu0 %v1065
    %1094 = vmatpush.msra.mxu0 %v1063
    %1095 = vmatpush.msra.mxu0 %v1061
    %1096 = vmatmul.f32.gmra.mxu0 %v1078
    %v1097 = vpop.f32.mrf.mxu0
    %v1098 = vadd.f32 0.0, %v1097
    %1099 = vdwg.mxu0
    %1100 = vmatpush.msra.mxu0 0.0
    %1101 = vmatpush.msra.mxu0 0.0
    %1102 = vmatpush.msra.mxu0 0.0
    %1103 = vmatpush.msra.mxu0 0.0
    %1104 = vmatpush.msra.mxu0 0.0
    %1105 = vmatpush.msra.mxu0 0.0
    %1106 = vmatpush.msra.mxu0 0.0
    %1107 = vmatpush.msra.mxu0 0.0
    %1108 = vmatpush.msra.mxu0 %v1076
    %1109 = vmatpush.msra.mxu0 %v1074
    %1110 = vmatpush.msra.mxu0 %v1072
    %1111 = vmatpush.msra.mxu0 %v1070
    %1112 = vmatpush.msra.mxu0 %v1068
    %1113 = vmatpush.msra.mxu0 %v1066
    %1114 = vmatpush.msra.mxu0 %v1064
    %1115 = vmatpush.msra.mxu0 %v1062
    %1116 = vmatmul.f32.gmra.mxu0 %v1078
    %v1117 = vpop.f32.mrf.mxu0
    %v1118 = vadd.f32 0.0, %v1117
    %1119 = vdwg.mxu0
    %v1122 = vrot.slane %v1118, 7
    %v1123 = vsel %vm232, %v1098, %v1122
    %v1125 = vadd.f32 %v1060, %v1123
    %v1126 = vxor.u32 %v1125, 2147483648
    %v1127 = vmul.f32 %v1126, 1.442695
    %v1128 = vpow.pop %v1127
    %v1129 = vadd.f32 %v1128, 1.0
    %v1130 = vrcp.pop %v1129
    %v1131 = vmul.f32 %v1129, %v1130
    %v1132 = vsub.f32 1.0, %v1131
    %v1133 = vmul.f32 %v1130, %v1132
    %v1134 = vadd.f32 %v1130, %v1133
    %vm1135 = vweird.f32 %v1129
    %vm1136 = vweird.f32 %v1130
    %vm1137 = vmor %vm1135, %vm1136
    %v1138 = vsel %vm1137, %v1130, %v1134
    %v1139 = vand.u32 2147483647, %v1129
    %vm1140 = vcmp.eq.f32.partialorder %v1139, 8.507059e+37
    %v1141 = vand.u32 %v1129, 2147483648
    %v1142 = vor.u32 1.1754944e-38, %v1141
    %v1143 = vsel %vm1140, %v1142, %v1138
    %v1144 = vmul.f32 1.0, %v1143
    %v1146 = vrot.slane %v1125, 1
    %v1148 = vtanh.pop %v1146
    %1149 = vrot.lane.b32.xlu0 %v1125, 64
    %v1150 = vpop.permute.xlu0 %1149
    %v1151 = vrot.slane %v1150, 1
    %v1153 = vxor.u32 %v1151, 2147483648
    %v1154 = vmul.f32 %v1153, 1.442695
    %v1155 = vpow.pop %v1154
    %v1156 = vadd.f32 %v1155, 1.0
    %v1157 = vrcp.pop %v1156
    %v1158 = vmul.f32 %v1156, %v1157
    %v1159 = vsub.f32 1.0, %v1158
    %v1160 = vmul.f32 %v1157, %v1159
    %v1161 = vadd.f32 %v1157, %v1160
    %vm1162 = vweird.f32 %v1156
    %vm1163 = vweird.f32 %v1157
    %vm1164 = vmor %vm1162, %vm1163
    %v1165 = vsel %vm1164, %v1157, %v1161
    %v1166 = vand.u32 2147483647, %v1156
    %vm1167 = vcmp.eq.f32.partialorder %v1166, 8.507059e+37
    %v1168 = vand.u32 %v1156, 2147483648
    %v1169 = vor.u32 1.1754944e-38, %v1168
    %v1170 = vsel %vm1167, %v1169, %v1165
    %v1171 = vmul.f32 1.0, %v1170
    %v1172 = vmul.f32 %v1144, %v1051
    %v1173 = vmul.f32 %v1144, %v1148
    %1175 = vrot.lane.b32.xlu0 %v1173, 64
    %v1176 = vpop.permute.xlu0 %1175
    %v1178 = vadd.f32 %v1172, %v1176
    %v1179 = vtanh.pop %v1178
    %1181 = vrot.lane.b32.xlu0 %v1179, 64
    %v1182 = vpop.permute.xlu0 %1181
    %v1184 = vmul.f32 %v1171, %v1182
    %1185 = vst.msk [vmem:[#allocation3 + $0x7] sm:$0x1] %vm295, %v1184
    %v1186 = vld [vmem:[#allocation3] sm:$0xff]
    %v1187 = vld [vmem:[%s4] sm:$0xff]
    %1189 = vrot.lane.b32.xlu0 %v1186, 96
    %v1190 = vpop.permute.xlu0 %1189
    %vm1192 = vcmask 64512
    %v1194 = vsel %vm1192, %v1187, 0
    %1196 = vmatpush.msra.mxu0 0.0
    %1197 = vmatpush.msra.mxu0 0.0
    %1198 = vmatpush.msra.mxu0 0.0
    %1199 = vmatpush.msra.mxu0 0.0
    %1200 = vmatpush.msra.mxu0 0.0
    %1201 = vmatpush.msra.mxu0 0.0
    %1202 = vmatpush.msra.mxu0 0.0
    %1203 = vmatpush.msra.mxu0 0.0
    %1204 = vmatpush.msra.mxu0 0.0
    %1205 = vmatpush.msra.mxu0 0.0
    %1206 = vmatpush.msra.mxu0 0.0
    %1207 = vmatpush.msra.mxu0 0.0
    %1208 = vmatpush.msra.mxu0 0.0
    %1209 = vmatpush.msra.mxu0 0.0
    %1210 = vmatpush.msra.mxu0 0.0
    %1211 = vmatpush.msra.mxu0 %v1190
    %1212 = vmatmul.f32.gmra.mxu0 %v1194
    %v1213 = vpop.f32.mrf.mxu0
    %v1214 = vadd.f32 0.0, %v1213
    %1215 = vdwg.mxu0
    %v1216 = vld [vmem:[#allocation9] sm:$0xff]
    %v1217 = vld [vmem:[#allocation9 + $0x8] sm:$0xff]
    %v1218 = vld [vmem:[#allocation9 + $0x10] sm:$0xff]
    %v1219 = vld [vmem:[#allocation9 + $0x18] sm:$0xff]
    %v1220 = vld [vmem:[#allocation10] sm:$0xff]
    %v1221 = vld [vmem:[#allocation10 + $0x8] sm:$0xff]
    %v1222 = vld [vmem:[#allocation10 + $0x10] sm:$0xff]
    %v1223 = vld [vmem:[#allocation10 + $0x18] sm:$0xff]
    %v1225 = vsel %vm122, %v1214, 0
    %1227 = vmatpush.msra.mxu0 0.0
    %1228 = vmatpush.msra.mxu0 0.0
    %1229 = vmatpush.msra.mxu0 0.0
    %1230 = vmatpush.msra.mxu0 0.0
    %1231 = vmatpush.msra.mxu0 0.0
    %1232 = vmatpush.msra.mxu0 0.0
    %1233 = vmatpush.msra.mxu0 0.0
    %1234 = vmatpush.msra.mxu0 0.0
    %1235 = vmatpush.msra.mxu0 0.0
    %1236 = vmatpush.msra.mxu0 0.0
    %1237 = vmatpush.msra.mxu0 0.0
    %1238 = vmatpush.msra.mxu0 0.0
    %1239 = vmatpush.msra.mxu0 %v1223
    %1240 = vmatpush.msra.mxu0 %v1222
    %1241 = vmatpush.msra.mxu0 %v1221
    %1242 = vmatpush.msra.mxu0 %v1220
    %1243 = vmatmul.f32.gmra.mxu0 %v1225
    %v1244 = vpop.f32.mrf.mxu0
    %v1245 = vadd.f32 0.0, %v1244
    %1246 = vdwg.mxu0
    %v1247 = vsel %vm122, %v1186, 0
    %1249 = vmatpush.msra.mxu0 0.0
    %1250 = vmatpush.msra.mxu0 0.0
    %1251 = vmatpush.msra.mxu0 0.0
    %1252 = vmatpush.msra.mxu0 0.0
    %1253 = vmatpush.msra.mxu0 0.0
    %1254 = vmatpush.msra.mxu0 0.0
    %1255 = vmatpush.msra.mxu0 0.0
    %1256 = vmatpush.msra.mxu0 0.0
    %1257 = vmatpush.msra.mxu0 0.0
    %1258 = vmatpush.msra.mxu0 0.0
    %1259 = vmatpush.msra.mxu0 0.0
    %1260 = vmatpush.msra.mxu0 0.0
    %1261 = vmatpush.msra.mxu0 %v1219
    %1262 = vmatpush.msra.mxu0 %v1218
    %1263 = vmatpush.msra.mxu0 %v1217
    %1264 = vmatpush.msra.mxu0 %v1216
    %1265 = vmatmul.f32.gmra.mxu0 %v1247
    %v1266 = vpop.f32.mrf.mxu0
    %v1267 = vadd.f32 %v1245, %v1266
    %1268 = vdwg.mxu0
    %v1269 = vld [vmem:[%s7] sm:$0x1]
    %v1271 = vperm.slane %v1269, 0
    %v1273 = vadd.f32 %v1267, %v1271
    %vm1274 = vcmp.lt.s32.totalorder %v95, 8
    %v1275 = vsel %vm1274, %v1273, -1e+30
    %1276 = vmax.xlane.f32.xlu0 %v1275
    %v1277 = vpop.xlane.xlu0 %1276
    %v1278 = vsub.f32 %v1275, %v1277
    %v1279 = vmul.f32 %v1278, 1.442695
    %v1280 = vpow.pop %v1279
    %v1281 = vsel %vm1274, %v1280, 0.0
    %1282 = vadd.xlane.f32.xlu0 %v1281
    %v1283 = vpop.xlane.xlu0 %1282
    %v1284 = vlog2.pop %v1283
    %v1285 = vmul.f32 %v1284, 0.6931472
    %v1286 = vsub.f32 %v1278, %v1285
    %1287 = vst [vmem:[#allocation12] sm:$0xff] %v1286
    // Predicated region
    $region50: #{tpu_custom_call.1} parent=1 // pred_check
      _
    $region51: #{tpu_custom_call.1} parent=1 // pred_check_branch
      %1289 = sbr.rel (0) target = $region53
    $region52: #{tpu_custom_call.1} parent=1 // pred_region
      %1291 = vsyncadd [#allocation6], 0
      %s1293 = sshll.u32 [#allocation12], 4
      %s1294 = int_to_ptr.vmem [resolvable:$true] %s1293
      %s1295 = sshll.u32 %s8, 4
      %s1296 = int_to_ptr.hbm [resolvable:$true] %s1295
      %1298 = dma.vmem_to_hbm [thread:$0]  %s1294, 128, %s1296, [#allocation6]
    $region53: #{tpu_custom_call.1} parent=1 // pred_fallthru
      _
    // Predicated region
    $region54: #{tpu_custom_call.1} parent=1 // pred_check
      _
    $region55: #{tpu_custom_call.1} parent=1 // pred_check_branch
      %1300 = sbr.rel (0) target = $region57
    $region56: #{tpu_custom_call.1} parent=1 // pred_region
      %1302 = dma.done [#allocation6], 128
    $region57: #{tpu_custom_call.1} parent=1 // pred_fallthru
      _
    %1303 = vsyncpa [#allocation5], 1
    %1304 = vsyncpa [#allocation8], 1
    %1305 = vsyncpa [#allocation11], 1
    %1306 = vsyncpa [#allocation6], 1

</llo_original>
